<compile_context>
chip_gen: v7x
topology: tpu7x:2x2x1
jax: 0.10.0
libtpu: 0.0.40
codegen_flags: <defaults>
</compile_context>

<pallas_src>
import functools

import jax
import jax.numpy as jnp
from jax import lax
from jax.experimental import pallas as pl
from jax.experimental.pallas import tpu as pltpu


def _round_up(n, m):
    return ((n + m - 1) // m) * m


def _vmem_capacity_bytes():
    """Physical per-core VMEM; fall back to the smallest (v7x, 64 MiB) if unknown."""
    try:
        info = pltpu.get_tpu_info()
        cap = getattr(info, "vmem_capacity_bytes", None)
        if cap:
            return int(cap)
    except Exception:
        pass
    return 64 * 1024 * 1024


def _patch_expand_kernel(x_ref, w_ref, g_ref, b_ref, o_ref, *, c, eps, fused, tbh, W):
    # x_ref : (tm, dim)       input token tile (tm = tbh*W on the fused path)
    # w_ref : (dim, 4*c)      linear weight transposed, bf16 (y = x @ W^T)
    # g_ref : (1, c)          LayerNorm gamma (f32)
    # b_ref : (1, c)          LayerNorm beta  (f32)
    # o_ref : fused -> (tbh, 2, W, 2*c) pixel-shuffled tile; slab -> (tm, 4*c)
    xb = x_ref[...].astype(jnp.bfloat16)
    y = jnp.dot(xb, w_ref[...], preferred_element_type=jnp.float32)   # (tm, 4c) f32

    gamma = g_ref[...]
    beta = b_ref[...]
    inv_c = 1.0 / c

    # Static unroll over the 4 sub-patches; each is a static lane slice of y.
    # Garbage rows from a partial edge block may produce NaN here — their writes are
    # dropped by Pallas edge masking, so this is harmless by construction.
    for p1 in range(2):
        for p2 in range(2):
            g = 2 * p1 + p2
            yg = y[:, g * c:(g + 1) * c]                              # (tm, c)
            mu = jnp.sum(yg, axis=-1, keepdims=True) * inv_c
            d = yg - mu
            var = jnp.sum(d * d, axis=-1, keepdims=True) * inv_c     # two-pass variance
            yn = (d * (lax.rsqrt(var + eps) * gamma) + beta).astype(o_ref.dtype)
            if fused:
                # Pixel-shuffle fused into the store.  The (tbh*W, c) -> (tbh, W, c)
                # reshape is a free sublane split because W % 8 == 0 on this path, and
                # the lane slice is vreg-aligned because c % 128 == 0.
                o_ref[:, p1, :, p2 * c:(p2 + 1) * c] = yn.reshape(tbh, W, c)
            else:
                o_ref[:, g * c:(g + 1) * c] = yn


def patch_expand(x_nchw, weight, gamma, beta, *, eps=1e-5, target_rows=1024,
                 out_dtype=None):
    """PatchExpand forward (dim_scale == 2). x_nchw: (B, dim, H, W) -> (B, 2H, 2W, dim//2)."""
    B, dim, H, W = x_nchw.shape
    assert dim % 2 == 0, "PatchExpand with dim_scale=2 requires an even dim"
    out_dim = 2 * dim
    c = dim // 2
    out_dtype = x_nchw.dtype if out_dtype is None else out_dtype
    # TODO(synk): emit bf16 output (out_dtype=jnp.bfloat16) when the consumer tolerates
    # it — halves output writeback on this bandwidth-bound op.

    # TODO(synk): fuse the NCHW->NHWC permute into the kernel's input DMA (requires a
    # transposed matmul orientation); today it is one extra HBM pass over the input.
    x = jnp.transpose(x_nchw, (0, 2, 3, 1)).reshape(B * H * W, dim)
    N = B * H * W
    BH = B * H

    x_item = x.dtype.itemsize
    o_item = jnp.dtype(out_dtype).itemsize

    vmem_cap = _vmem_capacity_bytes()
    budget = int(vmem_cap * 0.45)                       # ~29 MiB on v7x, ~57 MiB on v5e/v6e
    vmem_limit = min(int(vmem_cap * 0.70), vmem_cap - 8 * 1024 * 1024)

    def vmem_bytes(tm):
        return (2 * tm * dim * x_item                   # double-buffered input tiles
                + 2 * tm * out_dim * o_item             # double-buffered output tiles
                + 2 * dim * out_dim * 2                 # bf16 weight (grid-invariant)
                + tm * dim * 2                          # in-kernel bf16 cast of x
                + 3 * tm * out_dim * 4                  # f32 y + LayerNorm temporaries
                + 4 * c * 4)                            # gamma/beta

    # Fused pixel-shuffle output only when stores stay lane-dense and the sublane
    # split is free; otherwise fall back to the flat slab + host-side rearrange.
    fused = (c % 128 == 0) and (W % 8 == 0)

    w_t = weight.T.astype(jnp.bfloat16)                 # (dim, 2*dim) MXU-native dtype
    g2d = gamma.reshape(1, c).astype(jnp.float32)
    b2d = beta.reshape(1, c).astype(jnp.float32)

    cost = pl.CostEstimate(
        flops=2 * N * dim * out_dim,
        transcendentals=4 * N,
        bytes_accessed=N * dim * x_item + dim * out_dim * 2 + N * out_dim * o_item)

    if fused:
        tbh = max(1, min(BH, target_rows // W))         # (b,h) rows per grid step
        while tbh > 1 and vmem_bytes(tbh * W) > budget:
            tbh = max(1, tbh // 2)
        tm = tbh * W
        n_steps = pl.cdiv(BH, tbh)
        out_shape = jax.ShapeDtypeStruct((BH, 2, W, 2 * c), out_dtype)
        out_spec = pl.BlockSpec((tbh, 2, W, 2 * c), lambda i: (i, 0, 0, 0))
        kernel = functools.partial(_patch_expand_kernel, c=c, eps=eps,
                                   fused=True, tbh=tbh, W=W)
    else:
        tm = min(_round_up(max(target_rows, 8), 8), _round_up(N, 8))
        while tm > 8 and vmem_bytes(tm) > budget:
            tm = max(8, (tm // 2 // 8) * 8)
        n_steps = pl.cdiv(N, tm)                        # ragged N: edge-masked, no pad
        out_shape = jax.ShapeDtypeStruct((N, out_dim), out_dtype)
        out_spec = pl.BlockSpec((tm, out_dim), lambda i: (i, 0))
        kernel = functools.partial(_patch_expand_kernel, c=c, eps=eps,
                                   fused=False, tbh=1, W=W)

    y = pl.pallas_call(
        kernel,
        out_shape=out_shape,
        grid_spec=pltpu.PrefetchScalarGridSpec(
            num_scalar_prefetch=0,
            grid=(n_steps,),
            in_specs=[
                pl.BlockSpec((tm, dim), lambda i: (i, 0)),
                pl.BlockSpec((dim, out_dim), lambda i: (0, 0)),   # grid-invariant weight
                pl.BlockSpec((1, c), lambda i: (0, 0)),
                pl.BlockSpec((1, c), lambda i: (0, 0)),
            ],
            out_specs=out_spec,
        ),
        compiler_params=pltpu.CompilerParams(
            dimension_semantics=("parallel",),
            vmem_limit_bytes=vmem_limit),
        cost_estimate=cost,
    )(x, w_t, g2d, b2d)

    if fused:
        # (BH, 2, W, 2c) row-major is exactly (b, h, p1, w, p2, c): free reshape.
        return y.reshape(B, 2 * H, 2 * W, c)

    # Slab fallback: rearrange 'b h w (p1 p2 c) -> b (h p1) (w p2) c' on the host.
    # TODO(synk): this is an extra HBM pass, only taken when c % 128 != 0 or W % 8 != 0.
    y = y.reshape(B, H, W, 2, 2, c)
    y = jnp.transpose(y, (0, 1, 3, 2, 4, 5)).reshape(B, 2 * H, 2 * W, c)
    return y


def patch_expand_ref(x_nchw, weight, gamma, beta, *, eps=1e-5):
    """Pure-JAX reference mirroring the PyTorch forward (bf16 matmul inputs to match
    the kernel's MXU numerics; accumulation and LayerNorm in f32)."""
    x = jnp.transpose(x_nchw, (0, 2, 3, 1))
    y = jnp.dot(x.astype(jnp.bfloat16), weight.T.astype(jnp.bfloat16),
                preferred_element_type=jnp.float32)
    B, H, W, C = y.shape
    c = C // 4
    y = y.reshape(B, H, W, 2, 2, c)
    y = jnp.transpose(y, (0, 1, 3, 2, 4, 5)).reshape(B, 2 * H, 2 * W, c)
    mean = y.mean(-1, keepdims=True)
    var = ((y - mean) ** 2).mean(-1, keepdims=True)
    return ((y - mean) * lax.rsqrt(var + eps) * gamma + beta).astype(x_nchw.dtype)


if __name__ == "__main__":
    key = jax.random.PRNGKey(0)
    k = jax.random.split(key, 12)

    def make_params(dim, kw, kg, kb):
        weight = jax.random.normal(kw, (2 * dim, dim), dtype=jnp.float32) * 0.05
        gamma = 1.0 + 0.1 * jax.random.normal(kg, (dim // 2,), dtype=jnp.float32)
        beta = 0.1 * jax.random.normal(kb, (dim // 2,), dtype=jnp.float32)
        return weight, gamma, beta

    # Case 1: small c (=32) -> slab output path, evenly tiled token count.
    B, dim, H, W = 2, 64, 8, 8
    w1, g1, b1 = make_params(dim, k[0], k[1], k[2])
    x1 = jax.random.normal(k[3], (B, dim, H, W), dtype=jnp.float32)
    o1 = jax.block_until_ready(patch_expand(x1, w1, g1, b1))
    r1 = patch_expand_ref(x1, w1, g1, b1)
    assert o1.shape == (B, 2 * H, 2 * W, dim // 2), o1.shape
    e1 = float(jnp.max(jnp.abs(o1 - r1)))
    assert e1 < 3e-3, f"case1 max abs err {e1}"

    # Case 2: c = 128, W % 8 == 0 -> fused pixel-shuffle output path.
    B, dim, H, W = 1, 256, 8, 8
    w2, g2, b2 = make_params(dim, k[4], k[5], k[6])
    x2 = jax.random.normal(k[7], (B, dim, H, W), dtype=jnp.float32)
    o2 = jax.block_until_ready(patch_expand(x2, w2, g2, b2))
    r2 = patch_expand_ref(x2, w2, g2, b2)
    assert o2.shape == (B, 2 * H, 2 * W, dim // 2), o2.shape
    e2 = float(jnp.max(jnp.abs(o2 - r2)))
    assert e2 < 3e-3, f"case2 max abs err {e2}"

    # Case 3: ragged token count (B*H*W not a multiple of the row tile) exercises the
    # pad-free edge-masked path.
    B, dim, H, W = 2, 64, 5, 5
    x3 = jax.random.normal(k[8], (B, dim, H, W), dtype=jnp.float32)
    o3 = jax.block_until_ready(patch_expand(x3, w1, g1, b1))
    r3 = patch_expand_ref(x3, w1, g1, b1)
    assert o3.shape == (B, 2 * H, 2 * W, dim // 2), o3.shape
    e3 = float(jnp.max(jnp.abs(o3 - r3)))
    assert e3 < 3e-3, f"case3 max abs err {e3}"

    print("KERNEL_OK")
</pallas_src>

<mosaic_0001>
module attributes {stable_mosaic.version = 11 : i64} {
  func.func @_patch_expand_kernel(%arg0: i32, %arg1: memref<128x64xf32, #tpu.memory_space<vmem>>, %arg2: memref<64x128xbf16, #tpu.memory_space<vmem>>, %arg3: memref<1x32xf32, #tpu.memory_space<vmem>>, %arg4: memref<1x32xf32, #tpu.memory_space<vmem>>, %arg5: memref<128x128xf32, #tpu.memory_space<vmem>>) attributes {dimension_semantics = [#tpu.dimension_semantics<parallel>], iteration_bounds = array<i64: 1>, scalar_prefetch = 0 : i64, scratch_operands = 0 : i64, tpu.core_type = #tpu.core_type<tc>, window_params = [{transform_indices = @transform_0, window_bounds = array<i64: 128, 64>}, {pipeline_mode = #tpu.pipeline_mode<synchronous>, transform_indices = @transform_1, window_bounds = array<i64: 64, 128>}, {pipeline_mode = #tpu.pipeline_mode<synchronous>, transform_indices = @transform_2, window_bounds = array<i64: 1, 32>}, {pipeline_mode = #tpu.pipeline_mode<synchronous>, transform_indices = @transform_3, window_bounds = array<i64: 1, 32>}, {transform_indices = @transform_4, window_bounds = array<i64: 128, 128>}]} {
    %c0 = arith.constant 0 : index
    %c0_0 = arith.constant 0 : index
    %0 = vector.load %arg1[%c0, %c0_0] : memref<128x64xf32, #tpu.memory_space<vmem>>, vector<128x64xf32>
    %1 = arith.truncf %0 : vector<128x64xf32> to vector<128x64xbf16>
    %c0_1 = arith.constant 0 : index
    %c0_2 = arith.constant 0 : index
    %2 = vector.load %arg2[%c0_1, %c0_2] : memref<64x128xbf16, #tpu.memory_space<vmem>>, vector<64x128xbf16>
    %cst = arith.constant dense<0.000000e+00> : vector<128x128xf32>
    %3 = tpu.matmul %1, %2, %cst {dimension_numbers = #tpu.dot_dimension_numbers<[1], [0], [0], [1], [0, 0, 1, 1], [], []>} : vector<128x64xbf16>, vector<64x128xbf16>, vector<128x128xf32> -> vector<128x128xf32>
    %c0_3 = arith.constant 0 : index
    %c0_4 = arith.constant 0 : index
    %4 = vector.load %arg3[%c0_3, %c0_4] : memref<1x32xf32, #tpu.memory_space<vmem>>, vector<1x32xf32>
    %c0_5 = arith.constant 0 : index
    %c0_6 = arith.constant 0 : index
    %5 = vector.load %arg4[%c0_5, %c0_6] : memref<1x32xf32, #tpu.memory_space<vmem>>, vector<1x32xf32>
    %6 = vector.extract_strided_slice %3 {offsets = [0, 0], sizes = [128, 32], strides = [1, 1]} : vector<128x128xf32> to vector<128x32xf32>
    %cst_7 = arith.constant dense<0.000000e+00> : vector<128xf32>
    %7 = vector.multi_reduction <add>, %6, %cst_7 [1] : vector<128x32xf32> to vector<128xf32>
    %8 = vector.shape_cast %7 : vector<128xf32> to vector<128x1xf32>
    %cst_8 = arith.constant 3.125000e-02 : f32
    %9 = vector.broadcast %cst_8 : f32 to vector<128x1xf32>
    %10 = arith.mulf %8, %9 : vector<128x1xf32>
    %11 = vector.broadcast %10 : vector<128x1xf32> to vector<128x32xf32>
    %12 = arith.subf %6, %11 : vector<128x32xf32>
    %13 = arith.mulf %12, %12 : vector<128x32xf32>
    %cst_9 = arith.constant dense<0.000000e+00> : vector<128xf32>
    %14 = vector.multi_reduction <add>, %13, %cst_9 [1] : vector<128x32xf32> to vector<128xf32>
    %15 = vector.shape_cast %14 : vector<128xf32> to vector<128x1xf32>
    %cst_10 = arith.constant 3.125000e-02 : f32
    %16 = vector.broadcast %cst_10 : f32 to vector<128x1xf32>
    %17 = arith.mulf %15, %16 : vector<128x1xf32>
    %cst_11 = arith.constant 9.99999974E-6 : f32
    %18 = vector.broadcast %cst_11 : f32 to vector<128x1xf32>
    %19 = arith.addf %17, %18 : vector<128x1xf32>
    %20 = math.rsqrt %19 : vector<128x1xf32>
    %21 = vector.broadcast %20 : vector<128x1xf32> to vector<128x32xf32>
    %22 = vector.broadcast %4 : vector<1x32xf32> to vector<128x32xf32>
    %23 = arith.mulf %21, %22 : vector<128x32xf32>
    %24 = arith.mulf %12, %23 : vector<128x32xf32>
    %25 = vector.broadcast %5 : vector<1x32xf32> to vector<128x32xf32>
    %26 = arith.addf %24, %25 : vector<128x32xf32>
    %c0_12 = arith.constant 0 : index
    %c0_13 = arith.constant 0 : index
    %27 = vector.load %arg5[%c0_12, %c0_13] : memref<128x128xf32, #tpu.memory_space<vmem>>, vector<128x32xf32>
    tpu.vector_store %arg5[%c0_12, %c0_13], %26 {strides = array<i32>} : memref<128x128xf32, #tpu.memory_space<vmem>>, vector<128x32xf32>,
    %28 = vector.extract_strided_slice %3 {offsets = [0, 32], sizes = [128, 32], strides = [1, 1]} : vector<128x128xf32> to vector<128x32xf32>
    %cst_14 = arith.constant dense<0.000000e+00> : vector<128xf32>
    %29 = vector.multi_reduction <add>, %28, %cst_14 [1] : vector<128x32xf32> to vector<128xf32>
    %30 = vector.shape_cast %29 : vector<128xf32> to vector<128x1xf32>
    %cst_15 = arith.constant 3.125000e-02 : f32
    %31 = vector.broadcast %cst_15 : f32 to vector<128x1xf32>
    %32 = arith.mulf %30, %31 : vector<128x1xf32>
    %33 = vector.broadcast %32 : vector<128x1xf32> to vector<128x32xf32>
    %34 = arith.subf %28, %33 : vector<128x32xf32>
    %35 = arith.mulf %34, %34 : vector<128x32xf32>
    %cst_16 = arith.constant dense<0.000000e+00> : vector<128xf32>
    %36 = vector.multi_reduction <add>, %35, %cst_16 [1] : vector<128x32xf32> to vector<128xf32>
    %37 = vector.shape_cast %36 : vector<128xf32> to vector<128x1xf32>
    %cst_17 = arith.constant 3.125000e-02 : f32
    %38 = vector.broadcast %cst_17 : f32 to vector<128x1xf32>
    %39 = arith.mulf %37, %38 : vector<128x1xf32>
    %cst_18 = arith.constant 9.99999974E-6 : f32
    %40 = vector.broadcast %cst_18 : f32 to vector<128x1xf32>
    %41 = arith.addf %39, %40 : vector<128x1xf32>
    %42 = math.rsqrt %41 : vector<128x1xf32>
    %43 = vector.broadcast %42 : vector<128x1xf32> to vector<128x32xf32>
    %44 = vector.broadcast %4 : vector<1x32xf32> to vector<128x32xf32>
    %45 = arith.mulf %43, %44 : vector<128x32xf32>
    %46 = arith.mulf %34, %45 : vector<128x32xf32>
    %47 = vector.broadcast %5 : vector<1x32xf32> to vector<128x32xf32>
    %48 = arith.addf %46, %47 : vector<128x32xf32>
    %c0_19 = arith.constant 0 : index
    %c32 = arith.constant 32 : index
    %49 = vector.load %arg5[%c0_19, %c32] : memref<128x128xf32, #tpu.memory_space<vmem>>, vector<128x32xf32>
    tpu.vector_store %arg5[%c0_19, %c32], %48 {strides = array<i32>} : memref<128x128xf32, #tpu.memory_space<vmem>>, vector<128x32xf32>,
    %50 = vector.extract_strided_slice %3 {offsets = [0, 64], sizes = [128, 32], strides = [1, 1]} : vector<128x128xf32> to vector<128x32xf32>
    %cst_20 = arith.constant dense<0.000000e+00> : vector<128xf32>
    %51 = vector.multi_reduction <add>, %50, %cst_20 [1] : vector<128x32xf32> to vector<128xf32>
    %52 = vector.shape_cast %51 : vector<128xf32> to vector<128x1xf32>
    %cst_21 = arith.constant 3.125000e-02 : f32
    %53 = vector.broadcast %cst_21 : f32 to vector<128x1xf32>
    %54 = arith.mulf %52, %53 : vector<128x1xf32>
    %55 = vector.broadcast %54 : vector<128x1xf32> to vector<128x32xf32>
    %56 = arith.subf %50, %55 : vector<128x32xf32>
    %57 = arith.mulf %56, %56 : vector<128x32xf32>
    %cst_22 = arith.constant dense<0.000000e+00> : vector<128xf32>
    %58 = vector.multi_reduction <add>, %57, %cst_22 [1] : vector<128x32xf32> to vector<128xf32>
    %59 = vector.shape_cast %58 : vector<128xf32> to vector<128x1xf32>
    %cst_23 = arith.constant 3.125000e-02 : f32
    %60 = vector.broadcast %cst_23 : f32 to vector<128x1xf32>
    %61 = arith.mulf %59, %60 : vector<128x1xf32>
    %cst_24 = arith.constant 9.99999974E-6 : f32
    %62 = vector.broadcast %cst_24 : f32 to vector<128x1xf32>
    %63 = arith.addf %61, %62 : vector<128x1xf32>
    %64 = math.rsqrt %63 : vector<128x1xf32>
    %65 = vector.broadcast %64 : vector<128x1xf32> to vector<128x32xf32>
    %66 = vector.broadcast %4 : vector<1x32xf32> to vector<128x32xf32>
    %67 = arith.mulf %65, %66 : vector<128x32xf32>
    %68 = arith.mulf %56, %67 : vector<128x32xf32>
    %69 = vector.broadcast %5 : vector<1x32xf32> to vector<128x32xf32>
    %70 = arith.addf %68, %69 : vector<128x32xf32>
    %c0_25 = arith.constant 0 : index
    %c64 = arith.constant 64 : index
    %71 = vector.load %arg5[%c0_25, %c64] : memref<128x128xf32, #tpu.memory_space<vmem>>, vector<128x32xf32>
    tpu.vector_store %arg5[%c0_25, %c64], %70 {strides = array<i32>} : memref<128x128xf32, #tpu.memory_space<vmem>>, vector<128x32xf32>,
    %72 = vector.extract_strided_slice %3 {offsets = [0, 96], sizes = [128, 32], strides = [1, 1]} : vector<128x128xf32> to vector<128x32xf32>
    %cst_26 = arith.constant dense<0.000000e+00> : vector<128xf32>
    %73 = vector.multi_reduction <add>, %72, %cst_26 [1] : vector<128x32xf32> to vector<128xf32>
    %74 = vector.shape_cast %73 : vector<128xf32> to vector<128x1xf32>
    %cst_27 = arith.constant 3.125000e-02 : f32
    %75 = vector.broadcast %cst_27 : f32 to vector<128x1xf32>
    %76 = arith.mulf %74, %75 : vector<128x1xf32>
    %77 = vector.broadcast %76 : vector<128x1xf32> to vector<128x32xf32>
    %78 = arith.subf %72, %77 : vector<128x32xf32>
    %79 = arith.mulf %78, %78 : vector<128x32xf32>
    %cst_28 = arith.constant dense<0.000000e+00> : vector<128xf32>
    %80 = vector.multi_reduction <add>, %79, %cst_28 [1] : vector<128x32xf32> to vector<128xf32>
    %81 = vector.shape_cast %80 : vector<128xf32> to vector<128x1xf32>
    %cst_29 = arith.constant 3.125000e-02 : f32
    %82 = vector.broadcast %cst_29 : f32 to vector<128x1xf32>
    %83 = arith.mulf %81, %82 : vector<128x1xf32>
    %cst_30 = arith.constant 9.99999974E-6 : f32
    %84 = vector.broadcast %cst_30 : f32 to vector<128x1xf32>
    %85 = arith.addf %83, %84 : vector<128x1xf32>
    %86 = math.rsqrt %85 : vector<128x1xf32>
    %87 = vector.broadcast %86 : vector<128x1xf32> to vector<128x32xf32>
    %88 = vector.broadcast %4 : vector<1x32xf32> to vector<128x32xf32>
    %89 = arith.mulf %87, %88 : vector<128x32xf32>
    %90 = arith.mulf %78, %89 : vector<128x32xf32>
    %91 = vector.broadcast %5 : vector<1x32xf32> to vector<128x32xf32>
    %92 = arith.addf %90, %91 : vector<128x32xf32>
    %c0_31 = arith.constant 0 : index
    %c96 = arith.constant 96 : index
    %93 = vector.load %arg5[%c0_31, %c96] : memref<128x128xf32, #tpu.memory_space<vmem>>, vector<128x32xf32>
    tpu.vector_store %arg5[%c0_31, %c96], %92 {strides = array<i32>} : memref<128x128xf32, #tpu.memory_space<vmem>>, vector<128x32xf32>,
    return
  }
  func.func @transform_0(%arg0: i32) -> (i32, i32) {
    %c0_i32 = arith.constant 0 : i32
    %c0_i32_0 = arith.constant 0 : i32
    return %arg0, %c0_i32 : i32, i32
  }
  func.func @transform_1(%arg0: i32) -> (i32, i32) {
    %c0_i32 = arith.constant 0 : i32
    %c0_i32_0 = arith.constant 0 : i32
    %c0_i32_1 = arith.constant 0 : i32
    return %c0_i32, %c0_i32_0 : i32, i32
  }
  func.func @transform_2(%arg0: i32) -> (i32, i32) {
    %c0_i32 = arith.constant 0 : i32
    %c0_i32_0 = arith.constant 0 : i32
    %c0_i32_1 = arith.constant 0 : i32
    return %c0_i32, %c0_i32_0 : i32, i32
  }
  func.func @transform_3(%arg0: i32) -> (i32, i32) {
    %c0_i32 = arith.constant 0 : i32
    %c0_i32_0 = arith.constant 0 : i32
    %c0_i32_1 = arith.constant 0 : i32
    return %c0_i32, %c0_i32_0 : i32, i32
  }
  func.func @transform_4(%arg0: i32) -> (i32, i32) {
    %c0_i32 = arith.constant 0 : i32
    %c0_i32_0 = arith.constant 0 : i32
    return %arg0, %c0_i32 : i32, i32
  }
}

</mosaic_0001>

<llo_original>
// kernel: tpu_custom_call.1
$region0: #{tpu_custom_call.1}
  #allocation0 [shape = 'u32[]', space=smem, size = 0x4, offset = 0x4, fixed_abs, tag = 'smem constant byte address 0x4 - core index']
  #allocation1 [shape = 'u32[144,128]{1,0:T(1,128)}', space=vmem, size = 0x12000, scoped, tag = 'internal scratch']
  %s0 = inlined_call_operand.vmem [shape: f32[128,64], index: 0, kind: input, shape index: {}]
  %s1 = inlined_call_operand.vmem [shape: bf16[64,128], index: 1, kind: input, shape index: {}]
  %s2 = inlined_call_operand.vmem [shape: f32[1,32], index: 2, kind: input, shape index: {}]
  %s3 = inlined_call_operand.vmem [shape: f32[1,32], index: 3, kind: input, shape index: {}]
  %s4 = inlined_call_operand.hbm [shape: f32[128,128], index: 4, kind: output, shape index: {}]
  %s5 = sld [smem:[#allocation0]]
  $region26: #{tpu_custom_call.1} parent=0
    _
  %s7 = ssub.s32 1, %s5
  %s8 = scalar_select 0, %s7, %s5
  $region1: #{tpu_custom_call.1} parent=0
    #allocation2 [shape = 'u8[65536]{0}', space=vmem, size = 0x10000, scoped, tag = 'output window, operand 0, single buffered']
    #allocation3 [shape = 's32[1]{0}', space=sflag, size = 0x4, scoped, tag = 'scoped memory for tpu_custom_call.1']
    %9 = vsyncpa [#allocation3], 0
    // Predicated region
    $region2: #{tpu_custom_call.1} parent=1 // pred_check
      _
    $region3: #{tpu_custom_call.1} parent=1 // pred_check_branch
      %11 = sbr.rel (0) target = $region5
    $region4: #{tpu_custom_call.1} parent=1 // pred_region
      _
    $region5: #{tpu_custom_call.1} parent=1 // pred_fallthru
      _
    // Predicated region
    $region6: #{tpu_custom_call.1} parent=1 // pred_check
      _
    $region7: #{tpu_custom_call.1} parent=1 // pred_check_branch
      %13 = sbr.rel (0) target = $region9
    $region8: #{tpu_custom_call.1} parent=1 // pred_region
      _
    $region9: #{tpu_custom_call.1} parent=1 // pred_fallthru
      _
    // Predicated region
    $region10: #{tpu_custom_call.1} parent=1 // pred_check
      _
    $region11: #{tpu_custom_call.1} parent=1 // pred_check_branch
      %15 = sbr.rel (0) target = $region13
    $region12: #{tpu_custom_call.1} parent=1 // pred_region
      _
    $region13: #{tpu_custom_call.1} parent=1 // pred_fallthru
      _
    // Predicated region
    $region14: #{tpu_custom_call.1} parent=1 // pred_check
      _
    $region15: #{tpu_custom_call.1} parent=1 // pred_check_branch
      %17 = sbr.rel (0) target = $region17
    $region16: #{tpu_custom_call.1} parent=1 // pred_region
      _
    $region17: #{tpu_custom_call.1} parent=1 // pred_fallthru
      _
    %v19 = vld [vmem:[%s0] sm:$0xff]
    %v20 = vld [vmem:[%s0 + $0x8] sm:$0xff]
    %v21 = vld [vmem:[%s0 + $0x10] sm:$0xff]
    %v22 = vld [vmem:[%s0 + $0x18] sm:$0xff]
    %v23 = vld [vmem:[%s0 + $0x20] sm:$0xff]
    %v24 = vld [vmem:[%s0 + $0x28] sm:$0xff]
    %v25 = vld [vmem:[%s0 + $0x30] sm:$0xff]
    %v26 = vld [vmem:[%s0 + $0x38] sm:$0xff]
    %v27 = vld [vmem:[%s0 + $0x40] sm:$0xff]
    %v28 = vld [vmem:[%s0 + $0x48] sm:$0xff]
    %v29 = vld [vmem:[%s0 + $0x50] sm:$0xff]
    %v30 = vld [vmem:[%s0 + $0x58] sm:$0xff]
    %v31 = vld [vmem:[%s0 + $0x60] sm:$0xff]
    %v32 = vld [vmem:[%s0 + $0x68] sm:$0xff]
    %v33 = vld [vmem:[%s0 + $0x70] sm:$0xff]
    %v34 = vld [vmem:[%s0 + $0x78] sm:$0xff]
    %v35 = vpack.c.bf16 %v20, %v19
    %v36 = vpack.c.bf16 %v22, %v21
    %v37 = vpack.c.bf16 %v24, %v23
    %v38 = vpack.c.bf16 %v26, %v25
    %v39 = vpack.c.bf16 %v28, %v27
    %v40 = vpack.c.bf16 %v30, %v29
    %v41 = vpack.c.bf16 %v32, %v31
    %v42 = vpack.c.bf16 %v34, %v33
    %v43 = vld [vmem:[%s1] sm:$0xf]
    %v44 = vld [vmem:[%s1 + $0x4] sm:$0xf]
    %v45 = vld [vmem:[%s1 + $0x8] sm:$0xf]
    %v46 = vld [vmem:[%s1 + $0xc] sm:$0xf]
    %v47 = vld [vmem:[%s1 + $0x10] sm:$0xf]
    %v48 = vld [vmem:[%s1 + $0x14] sm:$0xf]
    %v49 = vld [vmem:[%s1 + $0x18] sm:$0xf]
    %v50 = vld [vmem:[%s1 + $0x1c] sm:$0xf]
    %v59 = vunpack.c.l.b16 %v43
    %v60 = vunpack.c.l.b16 %v44
    %v61 = vunpack.c.l.b16 %v45
    %v62 = vunpack.c.l.b16 %v46
    %v63 = vunpack.c.l.b16 %v47
    %v64 = vunpack.c.l.b16 %v48
    %v65 = vunpack.c.l.b16 %v49
    %v66 = vunpack.c.l.b16 %v50
    %v67 = vpack.c.b16 %v60, %v59
    %v68 = vpack.c.b16 %v62, %v61
    %v69 = vpack.c.b16 %v64, %v63
    %v70 = vpack.c.b16 %v66, %v65
    %vm75 = vcmask 523264
    %v77 = vsel %vm75, %v35, 0
    %v80 = vsel %vm75, %v36, 0
    %v83 = vsel %vm75, %v37, 0
    %v86 = vsel %vm75, %v38, 0
    %v89 = vsel %vm75, %v39, 0
    %v92 = vsel %vm75, %v40, 0
    %v95 = vsel %vm75, %v41, 0
    %v98 = vsel %vm75, %v42, 0
    %100 = vmatprep.subr.bf16.mxu0 0
    %101 = vmatpush1.bf16.msra.mxu0 %v67
    %102 = vmatprep.subr.bf16.mxu0 0
    %103 = vmatpush1.bf16.msra.mxu0 %v68
    %104 = vmatprep.subr.bf16.mxu0 0
    %105 = vmatpush1.bf16.msra.mxu0 %v69
    %106 = vmatprep.subr.bf16.mxu0 0
    %107 = vmatpush1.bf16.msra.mxu0 %v70
    %108 = vmatprep.subr.bf16.mxu0 0
    %109 = vmatpush1.bf16.msra.mxu0 0
    %110 = vmatprep.subr.bf16.mxu0 0
    %111 = vmatpush1.bf16.msra.mxu0 0
    %112 = vmatprep.subr.bf16.mxu0 0
    %113 = vmatpush1.bf16.msra.mxu0 0
    %114 = vmatprep.subr.bf16.mxu0 0
    %115 = vmatpush1.bf16.msra.mxu0 0
    %116 = vmatprep.subr.bf16.mxu0 0
    %117 = vmatpush1.bf16.msra.mxu0 0
    %118 = vmatprep.subr.bf16.mxu0 0
    %119 = vmatpush1.bf16.msra.mxu0 0
    %120 = vmatprep.subr.bf16.mxu0 0
    %121 = vmatpush1.bf16.msra.mxu0 0
    %122 = vmatprep.subr.bf16.mxu0 0
    %123 = vmatpush1.bf16.msra.mxu0 0
    %124 = vmatprep.subr.bf16.mxu0 0
    %125 = vmatpush1.bf16.msra.mxu0 0
    %126 = vmatprep.subr.bf16.mxu0 0
    %127 = vmatpush1.bf16.msra.mxu0 0
    %128 = vmatprep.subr.bf16.mxu0 0
    %129 = vmatpush1.bf16.msra.mxu0 0
    %130 = vmatprep.subr.bf16.mxu0 0
    %131 = vmatpush1.bf16.msra.mxu0 0
    %132 = vmatprep.mubr.bf16.mxu0 0
    %133 = vmatmul.mubr.bf16.gmra.mrb[0].mxu0 %v77
    %v134 = vpop.f32.mrb[0].mxu0
    %v135 = vadd.f32 0.0, %v134
    %v136 = vpop.f32.mrb[0].mxu0
    %v137 = vpop.f32.mrb[0].mxu0
    %v138 = vadd.f32 0.0, %v137
    %v139 = vpop.f32.mrb[0].mxu0
    %140 = vmatprep.mubr.bf16.mxu0 0
    %141 = vmatmul.mubr.bf16.gmra.mrb[0].mxu0 %v80
    %v142 = vpop.f32.mrb[0].mxu0
    %v143 = vadd.f32 0.0, %v142
    %v144 = vpop.f32.mrb[0].mxu0
    %v145 = vpop.f32.mrb[0].mxu0
    %v146 = vadd.f32 0.0, %v145
    %v147 = vpop.f32.mrb[0].mxu0
    %148 = vmatprep.mubr.bf16.mxu0 0
    %149 = vmatmul.mubr.bf16.gmra.mrb[0].mxu0 %v83
    %v150 = vpop.f32.mrb[0].mxu0
    %v151 = vadd.f32 0.0, %v150
    %v152 = vpop.f32.mrb[0].mxu0
    %v153 = vpop.f32.mrb[0].mxu0
    %v154 = vadd.f32 0.0, %v153
    %v155 = vpop.f32.mrb[0].mxu0
    %156 = vmatprep.mubr.bf16.mxu0 0
    %157 = vmatmul.mubr.bf16.gmra.mrb[0].mxu0 %v86
    %v158 = vpop.f32.mrb[0].mxu0
    %v159 = vadd.f32 0.0, %v158
    %v160 = vpop.f32.mrb[0].mxu0
    %v161 = vpop.f32.mrb[0].mxu0
    %v162 = vadd.f32 0.0, %v161
    %v163 = vpop.f32.mrb[0].mxu0
    %164 = vmatprep.mubr.bf16.mxu0 0
    %165 = vmatmul.mubr.bf16.gmra.mrb[0].mxu0 %v89
    %v166 = vpop.f32.mrb[0].mxu0
    %v167 = vadd.f32 0.0, %v166
    %v168 = vpop.f32.mrb[0].mxu0
    %v169 = vpop.f32.mrb[0].mxu0
    %v170 = vadd.f32 0.0, %v169
    %v171 = vpop.f32.mrb[0].mxu0
    %172 = vmatprep.mubr.bf16.mxu0 0
    %173 = vmatmul.mubr.bf16.gmra.mrb[0].mxu0 %v92
    %v174 = vpop.f32.mrb[0].mxu0
    %v175 = vadd.f32 0.0, %v174
    %v176 = vpop.f32.mrb[0].mxu0
    %v177 = vpop.f32.mrb[0].mxu0
    %v178 = vadd.f32 0.0, %v177
    %v179 = vpop.f32.mrb[0].mxu0
    %180 = vmatprep.mubr.bf16.mxu0 0
    %181 = vmatmul.mubr.bf16.gmra.mrb[0].mxu0 %v95
    %v182 = vpop.f32.mrb[0].mxu0
    %v183 = vadd.f32 0.0, %v182
    %v184 = vpop.f32.mrb[0].mxu0
    %v185 = vpop.f32.mrb[0].mxu0
    %v186 = vadd.f32 0.0, %v185
    %v187 = vpop.f32.mrb[0].mxu0
    %188 = vmatprep.mubr.bf16.mxu0 0
    %189 = vmatmul.mubr.bf16.gmra.mrb[0].mxu0 %v98
    %v190 = vpop.f32.mrb[0].mxu0
    %v191 = vadd.f32 0.0, %v190
    %v192 = vpop.f32.mrb[0].mxu0
    %v193 = vpop.f32.mrb[0].mxu0
    %v194 = vadd.f32 0.0, %v193
    %v195 = vpop.f32.mrb[0].mxu0
    %196 = vdwg.mxu0
    %v197 = vld [vmem:[%s2] sm:$0x1]
    %v198 = vld [vmem:[%s3] sm:$0x1]
    %vm199 = vcmask 261120
    %v200 = vsel %vm199, %v135, 0.0
    %201 = vadd.xlane.f32.xlu0 %v200
    %v202 = vpop.xlane.xlu0 %201
    %v203 = vsel %vm199, %v138, 0.0
    %204 = vadd.xlane.f32.xlu0 %v203
    %v205 = vpop.xlane.xlu0 %204
    %v206 = vsel %vm199, %v143, 0.0
    %207 = vadd.xlane.f32.xlu0 %v206
    %v208 = vpop.xlane.xlu0 %207
    %v209 = vsel %vm199, %v146, 0.0
    %210 = vadd.xlane.f32.xlu0 %v209
    %v211 = vpop.xlane.xlu0 %210
    %v212 = vsel %vm199, %v151, 0.0
    %213 = vadd.xlane.f32.xlu0 %v212
    %v214 = vpop.xlane.xlu0 %213
    %v215 = vsel %vm199, %v154, 0.0
    %216 = vadd.xlane.f32.xlu0 %v215
    %v217 = vpop.xlane.xlu0 %216
    %v218 = vsel %vm199, %v159, 0.0
    %219 = vadd.xlane.f32.xlu0 %v218
    %v220 = vpop.xlane.xlu0 %219
    %v221 = vsel %vm199, %v162, 0.0
    %222 = vadd.xlane.f32.xlu0 %v221
    %v223 = vpop.xlane.xlu0 %222
    %v224 = vsel %vm199, %v167, 0.0
    %225 = vadd.xlane.f32.xlu0 %v224
    %v226 = vpop.xlane.xlu0 %225
    %v227 = vsel %vm199, %v170, 0.0
    %228 = vadd.xlane.f32.xlu0 %v227
    %v229 = vpop.xlane.xlu0 %228
    %v230 = vsel %vm199, %v175, 0.0
    %231 = vadd.xlane.f32.xlu0 %v230
    %v232 = vpop.xlane.xlu0 %231
    %v233 = vsel %vm199, %v178, 0.0
    %234 = vadd.xlane.f32.xlu0 %v233
    %v235 = vpop.xlane.xlu0 %234
    %v236 = vsel %vm199, %v183, 0.0
    %237 = vadd.xlane.f32.xlu0 %v236
    %v238 = vpop.xlane.xlu0 %237
    %v239 = vsel %vm199, %v186, 0.0
    %240 = vadd.xlane.f32.xlu0 %v239
    %v241 = vpop.xlane.xlu0 %240
    %v242 = vsel %vm199, %v191, 0.0
    %243 = vadd.xlane.f32.xlu0 %v242
    %v244 = vpop.xlane.xlu0 %243
    %v245 = vsel %vm199, %v194, 0.0
    %246 = vadd.xlane.f32.xlu0 %v245
    %v247 = vpop.xlane.xlu0 %246
    %v248 = vmul.f32 %v202, 0.03125
    %v249 = vmul.f32 %v205, 0.03125
    %v250 = vmul.f32 %v208, 0.03125
    %v251 = vmul.f32 %v211, 0.03125
    %v252 = vmul.f32 %v214, 0.03125
    %v253 = vmul.f32 %v217, 0.03125
    %v254 = vmul.f32 %v220, 0.03125
    %v255 = vmul.f32 %v223, 0.03125
    %v256 = vmul.f32 %v226, 0.03125
    %v257 = vmul.f32 %v229, 0.03125
    %v258 = vmul.f32 %v232, 0.03125
    %v259 = vmul.f32 %v235, 0.03125
    %v260 = vmul.f32 %v238, 0.03125
    %v261 = vmul.f32 %v241, 0.03125
    %v262 = vmul.f32 %v244, 0.03125
    %v263 = vmul.f32 %v247, 0.03125
    %v264 = vsub.f32 %v135, %v248
    %v265 = vsub.f32 %v138, %v249
    %v266 = vsub.f32 %v143, %v250
    %v267 = vsub.f32 %v146, %v251
    %v268 = vsub.f32 %v151, %v252
    %v269 = vsub.f32 %v154, %v253
    %v270 = vsub.f32 %v159, %v254
    %v271 = vsub.f32 %v162, %v255
    %v272 = vsub.f32 %v167, %v256
    %v273 = vsub.f32 %v170, %v257
    %v274 = vsub.f32 %v175, %v258
    %v275 = vsub.f32 %v178, %v259
    %v276 = vsub.f32 %v183, %v260
    %v277 = vsub.f32 %v186, %v261
    %v278 = vsub.f32 %v191, %v262
    %v279 = vsub.f32 %v194, %v263
    %v280 = vmul.f32 %v264, %v264
    %v281 = vmul.f32 %v265, %v265
    %v282 = vmul.f32 %v266, %v266
    %v283 = vmul.f32 %v267, %v267
    %v284 = vmul.f32 %v268, %v268
    %v285 = vmul.f32 %v269, %v269
    %v286 = vmul.f32 %v270, %v270
    %v287 = vmul.f32 %v271, %v271
    %v288 = vmul.f32 %v272, %v272
    %v289 = vmul.f32 %v273, %v273
    %v290 = vmul.f32 %v274, %v274
    %v291 = vmul.f32 %v275, %v275
    %v292 = vmul.f32 %v276, %v276
    %v293 = vmul.f32 %v277, %v277
    %v294 = vmul.f32 %v278, %v278
    %v295 = vmul.f32 %v279, %v279
    %v296 = vsel %vm199, %v280, 0.0
    %297 = vadd.xlane.f32.xlu0 %v296
    %v298 = vpop.xlane.xlu0 %297
    %v299 = vsel %vm199, %v281, 0.0
    %300 = vadd.xlane.f32.xlu0 %v299
    %v301 = vpop.xlane.xlu0 %300
    %v302 = vsel %vm199, %v282, 0.0
    %303 = vadd.xlane.f32.xlu0 %v302
    %v304 = vpop.xlane.xlu0 %303
    %v305 = vsel %vm199, %v283, 0.0
    %306 = vadd.xlane.f32.xlu0 %v305
    %v307 = vpop.xlane.xlu0 %306
    %v308 = vsel %vm199, %v284, 0.0
    %309 = vadd.xlane.f32.xlu0 %v308
    %v310 = vpop.xlane.xlu0 %309
    %v311 = vsel %vm199, %v285, 0.0
    %312 = vadd.xlane.f32.xlu0 %v311
    %v313 = vpop.xlane.xlu0 %312
    %v314 = vsel %vm199, %v286, 0.0
    %315 = vadd.xlane.f32.xlu0 %v314
    %v316 = vpop.xlane.xlu0 %315
    %v317 = vsel %vm199, %v287, 0.0
    %318 = vadd.xlane.f32.xlu0 %v317
    %v319 = vpop.xlane.xlu0 %318
    %v320 = vsel %vm199, %v288, 0.0
    %321 = vadd.xlane.f32.xlu0 %v320
    %v322 = vpop.xlane.xlu0 %321
    %v323 = vsel %vm199, %v289, 0.0
    %324 = vadd.xlane.f32.xlu0 %v323
    %v325 = vpop.xlane.xlu0 %324
    %v326 = vsel %vm199, %v290, 0.0
    %327 = vadd.xlane.f32.xlu0 %v326
    %v328 = vpop.xlane.xlu0 %327
    %v329 = vsel %vm199, %v291, 0.0
    %330 = vadd.xlane.f32.xlu0 %v329
    %v331 = vpop.xlane.xlu0 %330
    %v332 = vsel %vm199, %v292, 0.0
    %333 = vadd.xlane.f32.xlu0 %v332
    %v334 = vpop.xlane.xlu0 %333
    %v335 = vsel %vm199, %v293, 0.0
    %336 = vadd.xlane.f32.xlu0 %v335
    %v337 = vpop.xlane.xlu0 %336
    %v338 = vsel %vm199, %v294, 0.0
    %339 = vadd.xlane.f32.xlu0 %v338
    %v340 = vpop.xlane.xlu0 %339
    %v341 = vsel %vm199, %v295, 0.0
    %342 = vadd.xlane.f32.xlu0 %v341
    %v343 = vpop.xlane.xlu0 %342
    %v344 = vmul.f32 %v298, 0.03125
    %v345 = vmul.f32 %v301, 0.03125
    %v346 = vmul.f32 %v304, 0.03125
    %v347 = vmul.f32 %v307, 0.03125
    %v348 = vmul.f32 %v310, 0.03125
    %v349 = vmul.f32 %v313, 0.03125
    %v350 = vmul.f32 %v316, 0.03125
    %v351 = vmul.f32 %v319, 0.03125
    %v352 = vmul.f32 %v322, 0.03125
    %v353 = vmul.f32 %v325, 0.03125
    %v354 = vmul.f32 %v328, 0.03125
    %v355 = vmul.f32 %v331, 0.03125
    %v356 = vmul.f32 %v334, 0.03125
    %v357 = vmul.f32 %v337, 0.03125
    %v358 = vmul.f32 %v340, 0.03125
    %v359 = vmul.f32 %v343, 0.03125
    %v360 = vadd.f32 %v344, 1e-05
    %v361 = vadd.f32 %v345, 1e-05
    %v362 = vadd.f32 %v346, 1e-05
    %v363 = vadd.f32 %v347, 1e-05
    %v364 = vadd.f32 %v348, 1e-05
    %v365 = vadd.f32 %v349, 1e-05
    %v366 = vadd.f32 %v350, 1e-05
    %v367 = vadd.f32 %v351, 1e-05
    %v368 = vadd.f32 %v352, 1e-05
    %v369 = vadd.f32 %v353, 1e-05
    %v370 = vadd.f32 %v354, 1e-05
    %v371 = vadd.f32 %v355, 1e-05
    %v372 = vadd.f32 %v356, 1e-05
    %v373 = vadd.f32 %v357, 1e-05
    %v374 = vadd.f32 %v358, 1e-05
    %v375 = vadd.f32 %v359, 1e-05
    %v376 = vrsqrt.pop %v360
    %v377 = vrsqrt.pop %v361
    %v378 = vrsqrt.pop %v362
    %v379 = vrsqrt.pop %v363
    %v380 = vrsqrt.pop %v364
    %v381 = vrsqrt.pop %v365
    %v382 = vrsqrt.pop %v366
    %v383 = vrsqrt.pop %v367
    %v384 = vrsqrt.pop %v368
    %v385 = vrsqrt.pop %v369
    %v386 = vrsqrt.pop %v370
    %v387 = vrsqrt.pop %v371
    %v388 = vrsqrt.pop %v372
    %v389 = vrsqrt.pop %v373
    %v390 = vrsqrt.pop %v374
    %v391 = vrsqrt.pop %v375
    %v393 = vlaneseq
    %v394 = vshrl.u32 %v393, 7
    %v395 = vsub.s32 0, %v394
    %v396 = vrot.slane %v197, %v395
    %v398 = vmul.f32 %v376, %v396
    %v399 = vmul.f32 %v377, %v396
    %v400 = vmul.f32 %v378, %v396
    %v401 = vmul.f32 %v379, %v396
    %v402 = vmul.f32 %v380, %v396
    %v403 = vmul.f32 %v381, %v396
    %v404 = vmul.f32 %v382, %v396
    %v405 = vmul.f32 %v383, %v396
    %v406 = vmul.f32 %v384, %v396
    %v407 = vmul.f32 %v385, %v396
    %v408 = vmul.f32 %v386, %v396
    %v409 = vmul.f32 %v387, %v396
    %v410 = vmul.f32 %v388, %v396
    %v411 = vmul.f32 %v389, %v396
    %v412 = vmul.f32 %v390, %v396
    %v413 = vmul.f32 %v391, %v396
    %v414 = vmul.f32 %v264, %v398
    %v415 = vmul.f32 %v265, %v399
    %v416 = vmul.f32 %v266, %v400
    %v417 = vmul.f32 %v267, %v401
    %v418 = vmul.f32 %v268, %v402
    %v419 = vmul.f32 %v269, %v403
    %v420 = vmul.f32 %v270, %v404
    %v421 = vmul.f32 %v271, %v405
    %v422 = vmul.f32 %v272, %v406
    %v423 = vmul.f32 %v273, %v407
    %v424 = vmul.f32 %v274, %v408
    %v425 = vmul.f32 %v275, %v409
    %v426 = vmul.f32 %v276, %v410
    %v427 = vmul.f32 %v277, %v411
    %v428 = vmul.f32 %v278, %v412
    %v429 = vmul.f32 %v279, %v413
    %v431 = vlaneseq
    %v432 = vshrl.u32 %v431, 7
    %v433 = vsub.s32 0, %v432
    %v434 = vrot.slane %v198, %v433
    %v436 = vadd.f32 %v414, %v434
    %v437 = vadd.f32 %v415, %v434
    %v438 = vadd.f32 %v416, %v434
    %v439 = vadd.f32 %v417, %v434
    %v440 = vadd.f32 %v418, %v434
    %v441 = vadd.f32 %v419, %v434
    %v442 = vadd.f32 %v420, %v434
    %v443 = vadd.f32 %v421, %v434
    %v444 = vadd.f32 %v422, %v434
    %v445 = vadd.f32 %v423, %v434
    %v446 = vadd.f32 %v424, %v434
    %v447 = vadd.f32 %v425, %v434
    %v448 = vadd.f32 %v426, %v434
    %v449 = vadd.f32 %v427, %v434
    %v450 = vadd.f32 %v428, %v434
    %v451 = vadd.f32 %v429, %v434
    %452 = vst.msk [vmem:[#allocation2] sm:$0xff] %vm199, %v436
    %453 = vst.msk [vmem:[#allocation2 + $0x8] sm:$0xff] %vm199, %v437
    %454 = vst.msk [vmem:[#allocation2 + $0x10] sm:$0xff] %vm199, %v438
    %455 = vst.msk [vmem:[#allocation2 + $0x18] sm:$0xff] %vm199, %v439
    %456 = vst.msk [vmem:[#allocation2 + $0x20] sm:$0xff] %vm199, %v440
    %457 = vst.msk [vmem:[#allocation2 + $0x28] sm:$0xff] %vm199, %v441
    %458 = vst.msk [vmem:[#allocation2 + $0x30] sm:$0xff] %vm199, %v442
    %459 = vst.msk [vmem:[#allocation2 + $0x38] sm:$0xff] %vm199, %v443
    %460 = vst.msk [vmem:[#allocation2 + $0x40] sm:$0xff] %vm199, %v444
    %461 = vst.msk [vmem:[#allocation2 + $0x48] sm:$0xff] %vm199, %v445
    %462 = vst.msk [vmem:[#allocation2 + $0x50] sm:$0xff] %vm199, %v446
    %463 = vst.msk [vmem:[#allocation2 + $0x58] sm:$0xff] %vm199, %v447
    %464 = vst.msk [vmem:[#allocation2 + $0x60] sm:$0xff] %vm199, %v448
    %465 = vst.msk [vmem:[#allocation2 + $0x68] sm:$0xff] %vm199, %v449
    %466 = vst.msk [vmem:[#allocation2 + $0x70] sm:$0xff] %vm199, %v450
    %467 = vst.msk [vmem:[#allocation2 + $0x78] sm:$0xff] %vm199, %v451
    %484 = vrot.lane.b32.xlu0 %v135, 96
    %v485 = vpop.permute.xlu0 %484
    %486 = vrot.lane.b32.xlu0 %v138, 96
    %v487 = vpop.permute.xlu0 %486
    %488 = vrot.lane.b32.xlu0 %v143, 96
    %v489 = vpop.permute.xlu0 %488
    %490 = vrot.lane.b32.xlu0 %v146, 96
    %v491 = vpop.permute.xlu0 %490
    %492 = vrot.lane.b32.xlu0 %v151, 96
    %v493 = vpop.permute.xlu0 %492
    %494 = vrot.lane.b32.xlu0 %v154, 96
    %v495 = vpop.permute.xlu0 %494
    %496 = vrot.lane.b32.xlu0 %v159, 96
    %v497 = vpop.permute.xlu0 %496
    %498 = vrot.lane.b32.xlu0 %v162, 96
    %v499 = vpop.permute.xlu0 %498
    %500 = vrot.lane.b32.xlu0 %v167, 96
    %v501 = vpop.permute.xlu0 %500
    %502 = vrot.lane.b32.xlu0 %v170, 96
    %v503 = vpop.permute.xlu0 %502
    %504 = vrot.lane.b32.xlu0 %v175, 96
    %v505 = vpop.permute.xlu0 %504
    %506 = vrot.lane.b32.xlu0 %v178, 96
    %v507 = vpop.permute.xlu0 %506
    %508 = vrot.lane.b32.xlu0 %v183, 96
    %v509 = vpop.permute.xlu0 %508
    %510 = vrot.lane.b32.xlu0 %v186, 96
    %v511 = vpop.permute.xlu0 %510
    %512 = vrot.lane.b32.xlu0 %v191, 96
    %v513 = vpop.permute.xlu0 %512
    %514 = vrot.lane.b32.xlu0 %v194, 96
    %v515 = vpop.permute.xlu0 %514
    %v532 = vsel %vm199, %v485, 0.0
    %533 = vadd.xlane.f32.xlu0 %v532
    %v534 = vpop.xlane.xlu0 %533
    %v535 = vsel %vm199, %v487, 0.0
    %536 = vadd.xlane.f32.xlu0 %v535
    %v537 = vpop.xlane.xlu0 %536
    %v538 = vsel %vm199, %v489, 0.0
    %539 = vadd.xlane.f32.xlu0 %v538
    %v540 = vpop.xlane.xlu0 %539
    %v541 = vsel %vm199, %v491, 0.0
    %542 = vadd.xlane.f32.xlu0 %v541
    %v543 = vpop.xlane.xlu0 %542
    %v544 = vsel %vm199, %v493, 0.0
    %545 = vadd.xlane.f32.xlu0 %v544
    %v546 = vpop.xlane.xlu0 %545
    %v547 = vsel %vm199, %v495, 0.0
    %548 = vadd.xlane.f32.xlu0 %v547
    %v549 = vpop.xlane.xlu0 %548
    %v550 = vsel %vm199, %v497, 0.0
    %551 = vadd.xlane.f32.xlu0 %v550
    %v552 = vpop.xlane.xlu0 %551
    %v553 = vsel %vm199, %v499, 0.0
    %554 = vadd.xlane.f32.xlu0 %v553
    %v555 = vpop.xlane.xlu0 %554
    %v556 = vsel %vm199, %v501, 0.0
    %557 = vadd.xlane.f32.xlu0 %v556
    %v558 = vpop.xlane.xlu0 %557
    %v559 = vsel %vm199, %v503, 0.0
    %560 = vadd.xlane.f32.xlu0 %v559
    %v561 = vpop.xlane.xlu0 %560
    %v562 = vsel %vm199, %v505, 0.0
    %563 = vadd.xlane.f32.xlu0 %v562
    %v564 = vpop.xlane.xlu0 %563
    %v565 = vsel %vm199, %v507, 0.0
    %566 = vadd.xlane.f32.xlu0 %v565
    %v567 = vpop.xlane.xlu0 %566
    %v568 = vsel %vm199, %v509, 0.0
    %569 = vadd.xlane.f32.xlu0 %v568
    %v570 = vpop.xlane.xlu0 %569
    %v571 = vsel %vm199, %v511, 0.0
    %572 = vadd.xlane.f32.xlu0 %v571
    %v573 = vpop.xlane.xlu0 %572
    %v574 = vsel %vm199, %v513, 0.0
    %575 = vadd.xlane.f32.xlu0 %v574
    %v576 = vpop.xlane.xlu0 %575
    %v577 = vsel %vm199, %v515, 0.0
    %578 = vadd.xlane.f32.xlu0 %v577
    %v579 = vpop.xlane.xlu0 %578
    %v580 = vmul.f32 %v534, 0.03125
    %v581 = vmul.f32 %v537, 0.03125
    %v582 = vmul.f32 %v540, 0.03125
    %v583 = vmul.f32 %v543, 0.03125
    %v584 = vmul.f32 %v546, 0.03125
    %v585 = vmul.f32 %v549, 0.03125
    %v586 = vmul.f32 %v552, 0.03125
    %v587 = vmul.f32 %v555, 0.03125
    %v588 = vmul.f32 %v558, 0.03125
    %v589 = vmul.f32 %v561, 0.03125
    %v590 = vmul.f32 %v564, 0.03125
    %v591 = vmul.f32 %v567, 0.03125
    %v592 = vmul.f32 %v570, 0.03125
    %v593 = vmul.f32 %v573, 0.03125
    %v594 = vmul.f32 %v576, 0.03125
    %v595 = vmul.f32 %v579, 0.03125
    %v596 = vsub.f32 %v135, %v580
    %v597 = vsub.f32 %v138, %v581
    %v598 = vsub.f32 %v143, %v582
    %v599 = vsub.f32 %v146, %v583
    %v600 = vsub.f32 %v151, %v584
    %v601 = vsub.f32 %v154, %v585
    %v602 = vsub.f32 %v159, %v586
    %v603 = vsub.f32 %v162, %v587
    %v604 = vsub.f32 %v167, %v588
    %v605 = vsub.f32 %v170, %v589
    %v606 = vsub.f32 %v175, %v590
    %v607 = vsub.f32 %v178, %v591
    %v608 = vsub.f32 %v183, %v592
    %v609 = vsub.f32 %v186, %v593
    %v610 = vsub.f32 %v191, %v594
    %v611 = vsub.f32 %v194, %v595
    %v612 = vmul.f32 %v596, %v596
    %v613 = vmul.f32 %v597, %v597
    %v614 = vmul.f32 %v598, %v598
    %v615 = vmul.f32 %v599, %v599
    %v616 = vmul.f32 %v600, %v600
    %v617 = vmul.f32 %v601, %v601
    %v618 = vmul.f32 %v602, %v602
    %v619 = vmul.f32 %v603, %v603
    %v620 = vmul.f32 %v604, %v604
    %v621 = vmul.f32 %v605, %v605
    %v622 = vmul.f32 %v606, %v606
    %v623 = vmul.f32 %v607, %v607
    %v624 = vmul.f32 %v608, %v608
    %v625 = vmul.f32 %v609, %v609
    %v626 = vmul.f32 %v610, %v610
    %v627 = vmul.f32 %v611, %v611
    %644 = vrot.lane.b32.xlu0 %v612, 96
    %v645 = vpop.permute.xlu0 %644
    %646 = vrot.lane.b32.xlu0 %v613, 96
    %v647 = vpop.permute.xlu0 %646
    %648 = vrot.lane.b32.xlu0 %v614, 96
    %v649 = vpop.permute.xlu0 %648
    %650 = vrot.lane.b32.xlu0 %v615, 96
    %v651 = vpop.permute.xlu0 %650
    %652 = vrot.lane.b32.xlu0 %v616, 96
    %v653 = vpop.permute.xlu0 %652
    %654 = vrot.lane.b32.xlu0 %v617, 96
    %v655 = vpop.permute.xlu0 %654
    %656 = vrot.lane.b32.xlu0 %v618, 96
    %v657 = vpop.permute.xlu0 %656
    %658 = vrot.lane.b32.xlu0 %v619, 96
    %v659 = vpop.permute.xlu0 %658
    %660 = vrot.lane.b32.xlu0 %v620, 96
    %v661 = vpop.permute.xlu0 %660
    %662 = vrot.lane.b32.xlu0 %v621, 96
    %v663 = vpop.permute.xlu0 %662
    %664 = vrot.lane.b32.xlu0 %v622, 96
    %v665 = vpop.permute.xlu0 %664
    %666 = vrot.lane.b32.xlu0 %v623, 96
    %v667 = vpop.permute.xlu0 %666
    %668 = vrot.lane.b32.xlu0 %v624, 96
    %v669 = vpop.permute.xlu0 %668
    %670 = vrot.lane.b32.xlu0 %v625, 96
    %v671 = vpop.permute.xlu0 %670
    %672 = vrot.lane.b32.xlu0 %v626, 96
    %v673 = vpop.permute.xlu0 %672
    %674 = vrot.lane.b32.xlu0 %v627, 96
    %v675 = vpop.permute.xlu0 %674
    %v692 = vsel %vm199, %v645, 0.0
    %693 = vadd.xlane.f32.xlu0 %v692
    %v694 = vpop.xlane.xlu0 %693
    %v695 = vsel %vm199, %v647, 0.0
    %696 = vadd.xlane.f32.xlu0 %v695
    %v697 = vpop.xlane.xlu0 %696
    %v698 = vsel %vm199, %v649, 0.0
    %699 = vadd.xlane.f32.xlu0 %v698
    %v700 = vpop.xlane.xlu0 %699
    %v701 = vsel %vm199, %v651, 0.0
    %702 = vadd.xlane.f32.xlu0 %v701
    %v703 = vpop.xlane.xlu0 %702
    %v704 = vsel %vm199, %v653, 0.0
    %705 = vadd.xlane.f32.xlu0 %v704
    %v706 = vpop.xlane.xlu0 %705
    %v707 = vsel %vm199, %v655, 0.0
    %708 = vadd.xlane.f32.xlu0 %v707
    %v709 = vpop.xlane.xlu0 %708
    %v710 = vsel %vm199, %v657, 0.0
    %711 = vadd.xlane.f32.xlu0 %v710
    %v712 = vpop.xlane.xlu0 %711
    %v713 = vsel %vm199, %v659, 0.0
    %714 = vadd.xlane.f32.xlu0 %v713
    %v715 = vpop.xlane.xlu0 %714
    %v716 = vsel %vm199, %v661, 0.0
    %717 = vadd.xlane.f32.xlu0 %v716
    %v718 = vpop.xlane.xlu0 %717
    %v719 = vsel %vm199, %v663, 0.0
    %720 = vadd.xlane.f32.xlu0 %v719
    %v721 = vpop.xlane.xlu0 %720
    %v722 = vsel %vm199, %v665, 0.0
    %723 = vadd.xlane.f32.xlu0 %v722
    %v724 = vpop.xlane.xlu0 %723
    %v725 = vsel %vm199, %v667, 0.0
    %726 = vadd.xlane.f32.xlu0 %v725
    %v727 = vpop.xlane.xlu0 %726
    %v728 = vsel %vm199, %v669, 0.0
    %729 = vadd.xlane.f32.xlu0 %v728
    %v730 = vpop.xlane.xlu0 %729
    %v731 = vsel %vm199, %v671, 0.0
    %732 = vadd.xlane.f32.xlu0 %v731
    %v733 = vpop.xlane.xlu0 %732
    %v734 = vsel %vm199, %v673, 0.0
    %735 = vadd.xlane.f32.xlu0 %v734
    %v736 = vpop.xlane.xlu0 %735
    %v737 = vsel %vm199, %v675, 0.0
    %738 = vadd.xlane.f32.xlu0 %v737
    %v739 = vpop.xlane.xlu0 %738
    %v740 = vmul.f32 %v694, 0.03125
    %v741 = vmul.f32 %v697, 0.03125
    %v742 = vmul.f32 %v700, 0.03125
    %v743 = vmul.f32 %v703, 0.03125
    %v744 = vmul.f32 %v706, 0.03125
    %v745 = vmul.f32 %v709, 0.03125
    %v746 = vmul.f32 %v712, 0.03125
    %v747 = vmul.f32 %v715, 0.03125
    %v748 = vmul.f32 %v718, 0.03125
    %v749 = vmul.f32 %v721, 0.03125
    %v750 = vmul.f32 %v724, 0.03125
    %v751 = vmul.f32 %v727, 0.03125
    %v752 = vmul.f32 %v730, 0.03125
    %v753 = vmul.f32 %v733, 0.03125
    %v754 = vmul.f32 %v736, 0.03125
    %v755 = vmul.f32 %v739, 0.03125
    %v756 = vadd.f32 %v740, 1e-05
    %v757 = vadd.f32 %v741, 1e-05
    %v758 = vadd.f32 %v742, 1e-05
    %v759 = vadd.f32 %v743, 1e-05
    %v760 = vadd.f32 %v744, 1e-05
    %v761 = vadd.f32 %v745, 1e-05
    %v762 = vadd.f32 %v746, 1e-05
    %v763 = vadd.f32 %v747, 1e-05
    %v764 = vadd.f32 %v748, 1e-05
    %v765 = vadd.f32 %v749, 1e-05
    %v766 = vadd.f32 %v750, 1e-05
    %v767 = vadd.f32 %v751, 1e-05
    %v768 = vadd.f32 %v752, 1e-05
    %v769 = vadd.f32 %v753, 1e-05
    %v770 = vadd.f32 %v754, 1e-05
    %v771 = vadd.f32 %v755, 1e-05
    %v772 = vrsqrt.pop %v756
    %v773 = vrsqrt.pop %v757
    %v774 = vrsqrt.pop %v758
    %v775 = vrsqrt.pop %v759
    %v776 = vrsqrt.pop %v760
    %v777 = vrsqrt.pop %v761
    %v778 = vrsqrt.pop %v762
    %v779 = vrsqrt.pop %v763
    %v780 = vrsqrt.pop %v764
    %v781 = vrsqrt.pop %v765
    %v782 = vrsqrt.pop %v766
    %v783 = vrsqrt.pop %v767
    %v784 = vrsqrt.pop %v768
    %v785 = vrsqrt.pop %v769
    %v786 = vrsqrt.pop %v770
    %v787 = vrsqrt.pop %v771
    %v788 = vmul.f32 %v772, %v396
    %v789 = vmul.f32 %v773, %v396
    %v790 = vmul.f32 %v774, %v396
    %v791 = vmul.f32 %v775, %v396
    %v792 = vmul.f32 %v776, %v396
    %v793 = vmul.f32 %v777, %v396
    %v794 = vmul.f32 %v778, %v396
    %v795 = vmul.f32 %v779, %v396
    %v796 = vmul.f32 %v780, %v396
    %v797 = vmul.f32 %v781, %v396
    %v798 = vmul.f32 %v782, %v396
    %v799 = vmul.f32 %v783, %v396
    %v800 = vmul.f32 %v784, %v396
    %v801 = vmul.f32 %v785, %v396
    %v802 = vmul.f32 %v786, %v396
    %v803 = vmul.f32 %v787, %v396
    %820 = vrot.lane.b32.xlu0 %v788, 32
    %v821 = vpop.permute.xlu0 %820
    %822 = vrot.lane.b32.xlu0 %v789, 32
    %v823 = vpop.permute.xlu0 %822
    %824 = vrot.lane.b32.xlu0 %v790, 32
    %v825 = vpop.permute.xlu0 %824
    %826 = vrot.lane.b32.xlu0 %v791, 32
    %v827 = vpop.permute.xlu0 %826
    %828 = vrot.lane.b32.xlu0 %v792, 32
    %v829 = vpop.permute.xlu0 %828
    %830 = vrot.lane.b32.xlu0 %v793, 32
    %v831 = vpop.permute.xlu0 %830
    %832 = vrot.lane.b32.xlu0 %v794, 32
    %v833 = vpop.permute.xlu0 %832
    %834 = vrot.lane.b32.xlu0 %v795, 32
    %v835 = vpop.permute.xlu0 %834
    %836 = vrot.lane.b32.xlu0 %v796, 32
    %v837 = vpop.permute.xlu0 %836
    %838 = vrot.lane.b32.xlu0 %v797, 32
    %v839 = vpop.permute.xlu0 %838
    %840 = vrot.lane.b32.xlu0 %v798, 32
    %v841 = vpop.permute.xlu0 %840
    %842 = vrot.lane.b32.xlu0 %v799, 32
    %v843 = vpop.permute.xlu0 %842
    %844 = vrot.lane.b32.xlu0 %v800, 32
    %v845 = vpop.permute.xlu0 %844
    %846 = vrot.lane.b32.xlu0 %v801, 32
    %v847 = vpop.permute.xlu0 %846
    %848 = vrot.lane.b32.xlu0 %v802, 32
    %v849 = vpop.permute.xlu0 %848
    %850 = vrot.lane.b32.xlu0 %v803, 32
    %v851 = vpop.permute.xlu0 %850
    %v868 = vmul.f32 %v596, %v821
    %v869 = vmul.f32 %v597, %v823
    %v870 = vmul.f32 %v598, %v825
    %v871 = vmul.f32 %v599, %v827
    %v872 = vmul.f32 %v600, %v829
    %v873 = vmul.f32 %v601, %v831
    %v874 = vmul.f32 %v602, %v833
    %v875 = vmul.f32 %v603, %v835
    %v876 = vmul.f32 %v604, %v837
    %v877 = vmul.f32 %v605, %v839
    %v878 = vmul.f32 %v606, %v841
    %v879 = vmul.f32 %v607, %v843
    %v880 = vmul.f32 %v608, %v845
    %v881 = vmul.f32 %v609, %v847
    %v882 = vmul.f32 %v610, %v849
    %v883 = vmul.f32 %v611, %v851
    %884 = vrot.lane.b32.xlu0 %v434, 32
    %v885 = vpop.permute.xlu0 %884
    %v887 = vadd.f32 %v868, %v885
    %v888 = vadd.f32 %v869, %v885
    %v889 = vadd.f32 %v870, %v885
    %v890 = vadd.f32 %v871, %v885
    %v891 = vadd.f32 %v872, %v885
    %v892 = vadd.f32 %v873, %v885
    %v893 = vadd.f32 %v874, %v885
    %v894 = vadd.f32 %v875, %v885
    %v895 = vadd.f32 %v876, %v885
    %v896 = vadd.f32 %v877, %v885
    %v897 = vadd.f32 %v878, %v885
    %v898 = vadd.f32 %v879, %v885
    %v899 = vadd.f32 %v880, %v885
    %v900 = vadd.f32 %v881, %v885
    %v901 = vadd.f32 %v882, %v885
    %v902 = vadd.f32 %v883, %v885
    %vm903 = vcmask 523520
    %904 = vst.msk [vmem:[#allocation2] sm:$0xff] %vm903, %v887
    %905 = vst.msk [vmem:[#allocation2 + $0x8] sm:$0xff] %vm903, %v888
    %906 = vst.msk [vmem:[#allocation2 + $0x10] sm:$0xff] %vm903, %v889
    %907 = vst.msk [vmem:[#allocation2 + $0x18] sm:$0xff] %vm903, %v890
    %908 = vst.msk [vmem:[#allocation2 + $0x20] sm:$0xff] %vm903, %v891
    %909 = vst.msk [vmem:[#allocation2 + $0x28] sm:$0xff] %vm903, %v892
    %910 = vst.msk [vmem:[#allocation2 + $0x30] sm:$0xff] %vm903, %v893
    %911 = vst.msk [vmem:[#allocation2 + $0x38] sm:$0xff] %vm903, %v894
    %912 = vst.msk [vmem:[#allocation2 + $0x40] sm:$0xff] %vm903, %v895
    %913 = vst.msk [vmem:[#allocation2 + $0x48] sm:$0xff] %vm903, %v896
    %914 = vst.msk [vmem:[#allocation2 + $0x50] sm:$0xff] %vm903, %v897
    %915 = vst.msk [vmem:[#allocation2 + $0x58] sm:$0xff] %vm903, %v898
    %916 = vst.msk [vmem:[#allocation2 + $0x60] sm:$0xff] %vm903, %v899
    %917 = vst.msk [vmem:[#allocation2 + $0x68] sm:$0xff] %vm903, %v900
    %918 = vst.msk [vmem:[#allocation2 + $0x70] sm:$0xff] %vm903, %v901
    %919 = vst.msk [vmem:[#allocation2 + $0x78] sm:$0xff] %vm903, %v902
    %920 = vrot.lane.b32.xlu0 %v135, 64
    %v921 = vpop.permute.xlu0 %920
    %922 = vrot.lane.b32.xlu0 %v138, 64
    %v923 = vpop.permute.xlu0 %922
    %924 = vrot.lane.b32.xlu0 %v143, 64
    %v925 = vpop.permute.xlu0 %924
    %926 = vrot.lane.b32.xlu0 %v146, 64
    %v927 = vpop.permute.xlu0 %926
    %928 = vrot.lane.b32.xlu0 %v151, 64
    %v929 = vpop.permute.xlu0 %928
    %930 = vrot.lane.b32.xlu0 %v154, 64
    %v931 = vpop.permute.xlu0 %930
    %932 = vrot.lane.b32.xlu0 %v159, 64
    %v933 = vpop.permute.xlu0 %932
    %934 = vrot.lane.b32.xlu0 %v162, 64
    %v935 = vpop.permute.xlu0 %934
    %936 = vrot.lane.b32.xlu0 %v167, 64
    %v937 = vpop.permute.xlu0 %936
    %938 = vrot.lane.b32.xlu0 %v170, 64
    %v939 = vpop.permute.xlu0 %938
    %940 = vrot.lane.b32.xlu0 %v175, 64
    %v941 = vpop.permute.xlu0 %940
    %942 = vrot.lane.b32.xlu0 %v178, 64
    %v943 = vpop.permute.xlu0 %942
    %944 = vrot.lane.b32.xlu0 %v183, 64
    %v945 = vpop.permute.xlu0 %944
    %946 = vrot.lane.b32.xlu0 %v186, 64
    %v947 = vpop.permute.xlu0 %946
    %948 = vrot.lane.b32.xlu0 %v191, 64
    %v949 = vpop.permute.xlu0 %948
    %950 = vrot.lane.b32.xlu0 %v194, 64
    %v951 = vpop.permute.xlu0 %950
    %v968 = vsel %vm199, %v921, 0.0
    %969 = vadd.xlane.f32.xlu0 %v968
    %v970 = vpop.xlane.xlu0 %969
    %v971 = vsel %vm199, %v923, 0.0
    %972 = vadd.xlane.f32.xlu0 %v971
    %v973 = vpop.xlane.xlu0 %972
    %v974 = vsel %vm199, %v925, 0.0
    %975 = vadd.xlane.f32.xlu0 %v974
    %v976 = vpop.xlane.xlu0 %975
    %v977 = vsel %vm199, %v927, 0.0
    %978 = vadd.xlane.f32.xlu0 %v977
    %v979 = vpop.xlane.xlu0 %978
    %v980 = vsel %vm199, %v929, 0.0
    %981 = vadd.xlane.f32.xlu0 %v980
    %v982 = vpop.xlane.xlu0 %981
    %v983 = vsel %vm199, %v931, 0.0
    %984 = vadd.xlane.f32.xlu0 %v983
    %v985 = vpop.xlane.xlu0 %984
    %v986 = vsel %vm199, %v933, 0.0
    %987 = vadd.xlane.f32.xlu0 %v986
    %v988 = vpop.xlane.xlu0 %987
    %v989 = vsel %vm199, %v935, 0.0
    %990 = vadd.xlane.f32.xlu0 %v989
    %v991 = vpop.xlane.xlu0 %990
    %v992 = vsel %vm199, %v937, 0.0
    %993 = vadd.xlane.f32.xlu0 %v992
    %v994 = vpop.xlane.xlu0 %993
    %v995 = vsel %vm199, %v939, 0.0
    %996 = vadd.xlane.f32.xlu0 %v995
    %v997 = vpop.xlane.xlu0 %996
    %v998 = vsel %vm199, %v941, 0.0
    %999 = vadd.xlane.f32.xlu0 %v998
    %v1000 = vpop.xlane.xlu0 %999
    %v1001 = vsel %vm199, %v943, 0.0
    %1002 = vadd.xlane.f32.xlu0 %v1001
    %v1003 = vpop.xlane.xlu0 %1002
    %v1004 = vsel %vm199, %v945, 0.0
    %1005 = vadd.xlane.f32.xlu0 %v1004
    %v1006 = vpop.xlane.xlu0 %1005
    %v1007 = vsel %vm199, %v947, 0.0
    %1008 = vadd.xlane.f32.xlu0 %v1007
    %v1009 = vpop.xlane.xlu0 %1008
    %v1010 = vsel %vm199, %v949, 0.0
    %1011 = vadd.xlane.f32.xlu0 %v1010
    %v1012 = vpop.xlane.xlu0 %1011
    %v1013 = vsel %vm199, %v951, 0.0
    %1014 = vadd.xlane.f32.xlu0 %v1013
    %v1015 = vpop.xlane.xlu0 %1014
    %v1016 = vmul.f32 %v970, 0.03125
    %v1017 = vmul.f32 %v973, 0.03125
    %v1018 = vmul.f32 %v976, 0.03125
    %v1019 = vmul.f32 %v979, 0.03125
    %v1020 = vmul.f32 %v982, 0.03125
    %v1021 = vmul.f32 %v985, 0.03125
    %v1022 = vmul.f32 %v988, 0.03125
    %v1023 = vmul.f32 %v991, 0.03125
    %v1024 = vmul.f32 %v994, 0.03125
    %v1025 = vmul.f32 %v997, 0.03125
    %v1026 = vmul.f32 %v1000, 0.03125
    %v1027 = vmul.f32 %v1003, 0.03125
    %v1028 = vmul.f32 %v1006, 0.03125
    %v1029 = vmul.f32 %v1009, 0.03125
    %v1030 = vmul.f32 %v1012, 0.03125
    %v1031 = vmul.f32 %v1015, 0.03125
    %v1032 = vsub.f32 %v135, %v1016
    %v1033 = vsub.f32 %v138, %v1017
    %v1034 = vsub.f32 %v143, %v1018
    %v1035 = vsub.f32 %v146, %v1019
    %v1036 = vsub.f32 %v151, %v1020
    %v1037 = vsub.f32 %v154, %v1021
    %v1038 = vsub.f32 %v159, %v1022
    %v1039 = vsub.f32 %v162, %v1023
    %v1040 = vsub.f32 %v167, %v1024
    %v1041 = vsub.f32 %v170, %v1025
    %v1042 = vsub.f32 %v175, %v1026
    %v1043 = vsub.f32 %v178, %v1027
    %v1044 = vsub.f32 %v183, %v1028
    %v1045 = vsub.f32 %v186, %v1029
    %v1046 = vsub.f32 %v191, %v1030
    %v1047 = vsub.f32 %v194, %v1031
    %v1048 = vmul.f32 %v1032, %v1032
    %v1049 = vmul.f32 %v1033, %v1033
    %v1050 = vmul.f32 %v1034, %v1034
    %v1051 = vmul.f32 %v1035, %v1035
    %v1052 = vmul.f32 %v1036, %v1036
    %v1053 = vmul.f32 %v1037, %v1037
    %v1054 = vmul.f32 %v1038, %v1038
    %v1055 = vmul.f32 %v1039, %v1039
    %v1056 = vmul.f32 %v1040, %v1040
    %v1057 = vmul.f32 %v1041, %v1041
    %v1058 = vmul.f32 %v1042, %v1042
    %v1059 = vmul.f32 %v1043, %v1043
    %v1060 = vmul.f32 %v1044, %v1044
    %v1061 = vmul.f32 %v1045, %v1045
    %v1062 = vmul.f32 %v1046, %v1046
    %v1063 = vmul.f32 %v1047, %v1047
    %1080 = vrot.lane.b32.xlu0 %v1048, 64
    %v1081 = vpop.permute.xlu0 %1080
    %1082 = vrot.lane.b32.xlu0 %v1049, 64
    %v1083 = vpop.permute.xlu0 %1082
    %1084 = vrot.lane.b32.xlu0 %v1050, 64
    %v1085 = vpop.permute.xlu0 %1084
    %1086 = vrot.lane.b32.xlu0 %v1051, 64
    %v1087 = vpop.permute.xlu0 %1086
    %1088 = vrot.lane.b32.xlu0 %v1052, 64
    %v1089 = vpop.permute.xlu0 %1088
    %1090 = vrot.lane.b32.xlu0 %v1053, 64
    %v1091 = vpop.permute.xlu0 %1090
    %1092 = vrot.lane.b32.xlu0 %v1054, 64
    %v1093 = vpop.permute.xlu0 %1092
    %1094 = vrot.lane.b32.xlu0 %v1055, 64
    %v1095 = vpop.permute.xlu0 %1094
    %1096 = vrot.lane.b32.xlu0 %v1056, 64
    %v1097 = vpop.permute.xlu0 %1096
    %1098 = vrot.lane.b32.xlu0 %v1057, 64
    %v1099 = vpop.permute.xlu0 %1098
    %1100 = vrot.lane.b32.xlu0 %v1058, 64
    %v1101 = vpop.permute.xlu0 %1100
    %1102 = vrot.lane.b32.xlu0 %v1059, 64
    %v1103 = vpop.permute.xlu0 %1102
    %1104 = vrot.lane.b32.xlu0 %v1060, 64
    %v1105 = vpop.permute.xlu0 %1104
    %1106 = vrot.lane.b32.xlu0 %v1061, 64
    %v1107 = vpop.permute.xlu0 %1106
    %1108 = vrot.lane.b32.xlu0 %v1062, 64
    %v1109 = vpop.permute.xlu0 %1108
    %1110 = vrot.lane.b32.xlu0 %v1063, 64
    %v1111 = vpop.permute.xlu0 %1110
    %v1128 = vsel %vm199, %v1081, 0.0
    %1129 = vadd.xlane.f32.xlu0 %v1128
    %v1130 = vpop.xlane.xlu0 %1129
    %v1131 = vsel %vm199, %v1083, 0.0
    %1132 = vadd.xlane.f32.xlu0 %v1131
    %v1133 = vpop.xlane.xlu0 %1132
    %v1134 = vsel %vm199, %v1085, 0.0
    %1135 = vadd.xlane.f32.xlu0 %v1134
    %v1136 = vpop.xlane.xlu0 %1135
    %v1137 = vsel %vm199, %v1087, 0.0
    %1138 = vadd.xlane.f32.xlu0 %v1137
    %v1139 = vpop.xlane.xlu0 %1138
    %v1140 = vsel %vm199, %v1089, 0.0
    %1141 = vadd.xlane.f32.xlu0 %v1140
    %v1142 = vpop.xlane.xlu0 %1141
    %v1143 = vsel %vm199, %v1091, 0.0
    %1144 = vadd.xlane.f32.xlu0 %v1143
    %v1145 = vpop.xlane.xlu0 %1144
    %v1146 = vsel %vm199, %v1093, 0.0
    %1147 = vadd.xlane.f32.xlu0 %v1146
    %v1148 = vpop.xlane.xlu0 %1147
    %v1149 = vsel %vm199, %v1095, 0.0
    %1150 = vadd.xlane.f32.xlu0 %v1149
    %v1151 = vpop.xlane.xlu0 %1150
    %v1152 = vsel %vm199, %v1097, 0.0
    %1153 = vadd.xlane.f32.xlu0 %v1152
    %v1154 = vpop.xlane.xlu0 %1153
    %v1155 = vsel %vm199, %v1099, 0.0
    %1156 = vadd.xlane.f32.xlu0 %v1155
    %v1157 = vpop.xlane.xlu0 %1156
    %v1158 = vsel %vm199, %v1101, 0.0
    %1159 = vadd.xlane.f32.xlu0 %v1158
    %v1160 = vpop.xlane.xlu0 %1159
    %v1161 = vsel %vm199, %v1103, 0.0
    %1162 = vadd.xlane.f32.xlu0 %v1161
    %v1163 = vpop.xlane.xlu0 %1162
    %v1164 = vsel %vm199, %v1105, 0.0
    %1165 = vadd.xlane.f32.xlu0 %v1164
    %v1166 = vpop.xlane.xlu0 %1165
    %v1167 = vsel %vm199, %v1107, 0.0
    %1168 = vadd.xlane.f32.xlu0 %v1167
    %v1169 = vpop.xlane.xlu0 %1168
    %v1170 = vsel %vm199, %v1109, 0.0
    %1171 = vadd.xlane.f32.xlu0 %v1170
    %v1172 = vpop.xlane.xlu0 %1171
    %v1173 = vsel %vm199, %v1111, 0.0
    %1174 = vadd.xlane.f32.xlu0 %v1173
    %v1175 = vpop.xlane.xlu0 %1174
    %v1176 = vmul.f32 %v1130, 0.03125
    %v1177 = vmul.f32 %v1133, 0.03125
    %v1178 = vmul.f32 %v1136, 0.03125
    %v1179 = vmul.f32 %v1139, 0.03125
    %v1180 = vmul.f32 %v1142, 0.03125
    %v1181 = vmul.f32 %v1145, 0.03125
    %v1182 = vmul.f32 %v1148, 0.03125
    %v1183 = vmul.f32 %v1151, 0.03125
    %v1184 = vmul.f32 %v1154, 0.03125
    %v1185 = vmul.f32 %v1157, 0.03125
    %v1186 = vmul.f32 %v1160, 0.03125
    %v1187 = vmul.f32 %v1163, 0.03125
    %v1188 = vmul.f32 %v1166, 0.03125
    %v1189 = vmul.f32 %v1169, 0.03125
    %v1190 = vmul.f32 %v1172, 0.03125
    %v1191 = vmul.f32 %v1175, 0.03125
    %v1192 = vadd.f32 %v1176, 1e-05
    %v1193 = vadd.f32 %v1177, 1e-05
    %v1194 = vadd.f32 %v1178, 1e-05
    %v1195 = vadd.f32 %v1179, 1e-05
    %v1196 = vadd.f32 %v1180, 1e-05
    %v1197 = vadd.f32 %v1181, 1e-05
    %v1198 = vadd.f32 %v1182, 1e-05
    %v1199 = vadd.f32 %v1183, 1e-05
    %v1200 = vadd.f32 %v1184, 1e-05
    %v1201 = vadd.f32 %v1185, 1e-05
    %v1202 = vadd.f32 %v1186, 1e-05
    %v1203 = vadd.f32 %v1187, 1e-05
    %v1204 = vadd.f32 %v1188, 1e-05
    %v1205 = vadd.f32 %v1189, 1e-05
    %v1206 = vadd.f32 %v1190, 1e-05
    %v1207 = vadd.f32 %v1191, 1e-05
    %v1208 = vrsqrt.pop %v1192
    %v1209 = vrsqrt.pop %v1193
    %v1210 = vrsqrt.pop %v1194
    %v1211 = vrsqrt.pop %v1195
    %v1212 = vrsqrt.pop %v1196
    %v1213 = vrsqrt.pop %v1197
    %v1214 = vrsqrt.pop %v1198
    %v1215 = vrsqrt.pop %v1199
    %v1216 = vrsqrt.pop %v1200
    %v1217 = vrsqrt.pop %v1201
    %v1218 = vrsqrt.pop %v1202
    %v1219 = vrsqrt.pop %v1203
    %v1220 = vrsqrt.pop %v1204
    %v1221 = vrsqrt.pop %v1205
    %v1222 = vrsqrt.pop %v1206
    %v1223 = vrsqrt.pop %v1207
    %v1224 = vmul.f32 %v1208, %v396
    %v1225 = vmul.f32 %v1209, %v396
    %v1226 = vmul.f32 %v1210, %v396
    %v1227 = vmul.f32 %v1211, %v396
    %v1228 = vmul.f32 %v1212, %v396
    %v1229 = vmul.f32 %v1213, %v396
    %v1230 = vmul.f32 %v1214, %v396
    %v1231 = vmul.f32 %v1215, %v396
    %v1232 = vmul.f32 %v1216, %v396
    %v1233 = vmul.f32 %v1217, %v396
    %v1234 = vmul.f32 %v1218, %v396
    %v1235 = vmul.f32 %v1219, %v396
    %v1236 = vmul.f32 %v1220, %v396
    %v1237 = vmul.f32 %v1221, %v396
    %v1238 = vmul.f32 %v1222, %v396
    %v1239 = vmul.f32 %v1223, %v396
    %1256 = vrot.lane.b32.xlu0 %v1224, 64
    %v1257 = vpop.permute.xlu0 %1256
    %1258 = vrot.lane.b32.xlu0 %v1225, 64
    %v1259 = vpop.permute.xlu0 %1258
    %1260 = vrot.lane.b32.xlu0 %v1226, 64
    %v1261 = vpop.permute.xlu0 %1260
    %1262 = vrot.lane.b32.xlu0 %v1227, 64
    %v1263 = vpop.permute.xlu0 %1262
    %1264 = vrot.lane.b32.xlu0 %v1228, 64
    %v1265 = vpop.permute.xlu0 %1264
    %1266 = vrot.lane.b32.xlu0 %v1229, 64
    %v1267 = vpop.permute.xlu0 %1266
    %1268 = vrot.lane.b32.xlu0 %v1230, 64
    %v1269 = vpop.permute.xlu0 %1268
    %1270 = vrot.lane.b32.xlu0 %v1231, 64
    %v1271 = vpop.permute.xlu0 %1270
    %1272 = vrot.lane.b32.xlu0 %v1232, 64
    %v1273 = vpop.permute.xlu0 %1272
    %1274 = vrot.lane.b32.xlu0 %v1233, 64
    %v1275 = vpop.permute.xlu0 %1274
    %1276 = vrot.lane.b32.xlu0 %v1234, 64
    %v1277 = vpop.permute.xlu0 %1276
    %1278 = vrot.lane.b32.xlu0 %v1235, 64
    %v1279 = vpop.permute.xlu0 %1278
    %1280 = vrot.lane.b32.xlu0 %v1236, 64
    %v1281 = vpop.permute.xlu0 %1280
    %1282 = vrot.lane.b32.xlu0 %v1237, 64
    %v1283 = vpop.permute.xlu0 %1282
    %1284 = vrot.lane.b32.xlu0 %v1238, 64
    %v1285 = vpop.permute.xlu0 %1284
    %1286 = vrot.lane.b32.xlu0 %v1239, 64
    %v1287 = vpop.permute.xlu0 %1286
    %v1304 = vmul.f32 %v1032, %v1257
    %v1305 = vmul.f32 %v1033, %v1259
    %v1306 = vmul.f32 %v1034, %v1261
    %v1307 = vmul.f32 %v1035, %v1263
    %v1308 = vmul.f32 %v1036, %v1265
    %v1309 = vmul.f32 %v1037, %v1267
    %v1310 = vmul.f32 %v1038, %v1269
    %v1311 = vmul.f32 %v1039, %v1271
    %v1312 = vmul.f32 %v1040, %v1273
    %v1313 = vmul.f32 %v1041, %v1275
    %v1314 = vmul.f32 %v1042, %v1277
    %v1315 = vmul.f32 %v1043, %v1279
    %v1316 = vmul.f32 %v1044, %v1281
    %v1317 = vmul.f32 %v1045, %v1283
    %v1318 = vmul.f32 %v1046, %v1285
    %v1319 = vmul.f32 %v1047, %v1287
    %1320 = vrot.lane.b32.xlu0 %v434, 64
    %v1321 = vpop.permute.xlu0 %1320
    %v1323 = vadd.f32 %v1304, %v1321
    %v1324 = vadd.f32 %v1305, %v1321
    %v1325 = vadd.f32 %v1306, %v1321
    %v1326 = vadd.f32 %v1307, %v1321
    %v1327 = vadd.f32 %v1308, %v1321
    %v1328 = vadd.f32 %v1309, %v1321
    %v1329 = vadd.f32 %v1310, %v1321
    %v1330 = vadd.f32 %v1311, %v1321
    %v1331 = vadd.f32 %v1312, %v1321
    %v1332 = vadd.f32 %v1313, %v1321
    %v1333 = vadd.f32 %v1314, %v1321
    %v1334 = vadd.f32 %v1315, %v1321
    %v1335 = vadd.f32 %v1316, %v1321
    %v1336 = vadd.f32 %v1317, %v1321
    %v1337 = vadd.f32 %v1318, %v1321
    %v1338 = vadd.f32 %v1319, %v1321
    %vm1339 = vcmask 785920
    %1340 = vst.msk [vmem:[#allocation2] sm:$0xff] %vm1339, %v1323
    %1341 = vst.msk [vmem:[#allocation2 + $0x8] sm:$0xff] %vm1339, %v1324
    %1342 = vst.msk [vmem:[#allocation2 + $0x10] sm:$0xff] %vm1339, %v1325
    %1343 = vst.msk [vmem:[#allocation2 + $0x18] sm:$0xff] %vm1339, %v1326
    %1344 = vst.msk [vmem:[#allocation2 + $0x20] sm:$0xff] %vm1339, %v1327
    %1345 = vst.msk [vmem:[#allocation2 + $0x28] sm:$0xff] %vm1339, %v1328
    %1346 = vst.msk [vmem:[#allocation2 + $0x30] sm:$0xff] %vm1339, %v1329
    %1347 = vst.msk [vmem:[#allocation2 + $0x38] sm:$0xff] %vm1339, %v1330
    %1348 = vst.msk [vmem:[#allocation2 + $0x40] sm:$0xff] %vm1339, %v1331
    %1349 = vst.msk [vmem:[#allocation2 + $0x48] sm:$0xff] %vm1339, %v1332
    %1350 = vst.msk [vmem:[#allocation2 + $0x50] sm:$0xff] %vm1339, %v1333
    %1351 = vst.msk [vmem:[#allocation2 + $0x58] sm:$0xff] %vm1339, %v1334
    %1352 = vst.msk [vmem:[#allocation2 + $0x60] sm:$0xff] %vm1339, %v1335
    %1353 = vst.msk [vmem:[#allocation2 + $0x68] sm:$0xff] %vm1339, %v1336
    %1354 = vst.msk [vmem:[#allocation2 + $0x70] sm:$0xff] %vm1339, %v1337
    %1355 = vst.msk [vmem:[#allocation2 + $0x78] sm:$0xff] %vm1339, %v1338
    %1356 = vrot.lane.b32.xlu0 %v135, 32
    %v1357 = vpop.permute.xlu0 %1356
    %1358 = vrot.lane.b32.xlu0 %v138, 32
    %v1359 = vpop.permute.xlu0 %1358
    %1360 = vrot.lane.b32.xlu0 %v143, 32
    %v1361 = vpop.permute.xlu0 %1360
    %1362 = vrot.lane.b32.xlu0 %v146, 32
    %v1363 = vpop.permute.xlu0 %1362
    %1364 = vrot.lane.b32.xlu0 %v151, 32
    %v1365 = vpop.permute.xlu0 %1364
    %1366 = vrot.lane.b32.xlu0 %v154, 32
    %v1367 = vpop.permute.xlu0 %1366
    %1368 = vrot.lane.b32.xlu0 %v159, 32
    %v1369 = vpop.permute.xlu0 %1368
    %1370 = vrot.lane.b32.xlu0 %v162, 32
    %v1371 = vpop.permute.xlu0 %1370
    %1372 = vrot.lane.b32.xlu0 %v167, 32
    %v1373 = vpop.permute.xlu0 %1372
    %1374 = vrot.lane.b32.xlu0 %v170, 32
    %v1375 = vpop.permute.xlu0 %1374
    %1376 = vrot.lane.b32.xlu0 %v175, 32
    %v1377 = vpop.permute.xlu0 %1376
    %1378 = vrot.lane.b32.xlu0 %v178, 32
    %v1379 = vpop.permute.xlu0 %1378
    %1380 = vrot.lane.b32.xlu0 %v183, 32
    %v1381 = vpop.permute.xlu0 %1380
    %1382 = vrot.lane.b32.xlu0 %v186, 32
    %v1383 = vpop.permute.xlu0 %1382
    %1384 = vrot.lane.b32.xlu0 %v191, 32
    %v1385 = vpop.permute.xlu0 %1384
    %1386 = vrot.lane.b32.xlu0 %v194, 32
    %v1387 = vpop.permute.xlu0 %1386
    %v1404 = vsel %vm199, %v1357, 0.0
    %1405 = vadd.xlane.f32.xlu0 %v1404
    %v1406 = vpop.xlane.xlu0 %1405
    %v1407 = vsel %vm199, %v1359, 0.0
    %1408 = vadd.xlane.f32.xlu0 %v1407
    %v1409 = vpop.xlane.xlu0 %1408
    %v1410 = vsel %vm199, %v1361, 0.0
    %1411 = vadd.xlane.f32.xlu0 %v1410
    %v1412 = vpop.xlane.xlu0 %1411
    %v1413 = vsel %vm199, %v1363, 0.0
    %1414 = vadd.xlane.f32.xlu0 %v1413
    %v1415 = vpop.xlane.xlu0 %1414
    %v1416 = vsel %vm199, %v1365, 0.0
    %1417 = vadd.xlane.f32.xlu0 %v1416
    %v1418 = vpop.xlane.xlu0 %1417
    %v1419 = vsel %vm199, %v1367, 0.0
    %1420 = vadd.xlane.f32.xlu0 %v1419
    %v1421 = vpop.xlane.xlu0 %1420
    %v1422 = vsel %vm199, %v1369, 0.0
    %1423 = vadd.xlane.f32.xlu0 %v1422
    %v1424 = vpop.xlane.xlu0 %1423
    %v1425 = vsel %vm199, %v1371, 0.0
    %1426 = vadd.xlane.f32.xlu0 %v1425
    %v1427 = vpop.xlane.xlu0 %1426
    %v1428 = vsel %vm199, %v1373, 0.0
    %1429 = vadd.xlane.f32.xlu0 %v1428
    %v1430 = vpop.xlane.xlu0 %1429
    %v1431 = vsel %vm199, %v1375, 0.0
    %1432 = vadd.xlane.f32.xlu0 %v1431
    %v1433 = vpop.xlane.xlu0 %1432
    %v1434 = vsel %vm199, %v1377, 0.0
    %1435 = vadd.xlane.f32.xlu0 %v1434
    %v1436 = vpop.xlane.xlu0 %1435
    %v1437 = vsel %vm199, %v1379, 0.0
    %1438 = vadd.xlane.f32.xlu0 %v1437
    %v1439 = vpop.xlane.xlu0 %1438
    %v1440 = vsel %vm199, %v1381, 0.0
    %1441 = vadd.xlane.f32.xlu0 %v1440
    %v1442 = vpop.xlane.xlu0 %1441
    %v1443 = vsel %vm199, %v1383, 0.0
    %1444 = vadd.xlane.f32.xlu0 %v1443
    %v1445 = vpop.xlane.xlu0 %1444
    %v1446 = vsel %vm199, %v1385, 0.0
    %1447 = vadd.xlane.f32.xlu0 %v1446
    %v1448 = vpop.xlane.xlu0 %1447
    %v1449 = vsel %vm199, %v1387, 0.0
    %1450 = vadd.xlane.f32.xlu0 %v1449
    %v1451 = vpop.xlane.xlu0 %1450
    %v1452 = vmul.f32 %v1406, 0.03125
    %v1453 = vmul.f32 %v1409, 0.03125
    %v1454 = vmul.f32 %v1412, 0.03125
    %v1455 = vmul.f32 %v1415, 0.03125
    %v1456 = vmul.f32 %v1418, 0.03125
    %v1457 = vmul.f32 %v1421, 0.03125
    %v1458 = vmul.f32 %v1424, 0.03125
    %v1459 = vmul.f32 %v1427, 0.03125
    %v1460 = vmul.f32 %v1430, 0.03125
    %v1461 = vmul.f32 %v1433, 0.03125
    %v1462 = vmul.f32 %v1436, 0.03125
    %v1463 = vmul.f32 %v1439, 0.03125
    %v1464 = vmul.f32 %v1442, 0.03125
    %v1465 = vmul.f32 %v1445, 0.03125
    %v1466 = vmul.f32 %v1448, 0.03125
    %v1467 = vmul.f32 %v1451, 0.03125
    %v1468 = vsub.f32 %v135, %v1452
    %v1469 = vsub.f32 %v138, %v1453
    %v1470 = vsub.f32 %v143, %v1454
    %v1471 = vsub.f32 %v146, %v1455
    %v1472 = vsub.f32 %v151, %v1456
    %v1473 = vsub.f32 %v154, %v1457
    %v1474 = vsub.f32 %v159, %v1458
    %v1475 = vsub.f32 %v162, %v1459
    %v1476 = vsub.f32 %v167, %v1460
    %v1477 = vsub.f32 %v170, %v1461
    %v1478 = vsub.f32 %v175, %v1462
    %v1479 = vsub.f32 %v178, %v1463
    %v1480 = vsub.f32 %v183, %v1464
    %v1481 = vsub.f32 %v186, %v1465
    %v1482 = vsub.f32 %v191, %v1466
    %v1483 = vsub.f32 %v194, %v1467
    %v1484 = vmul.f32 %v1468, %v1468
    %v1485 = vmul.f32 %v1469, %v1469
    %v1486 = vmul.f32 %v1470, %v1470
    %v1487 = vmul.f32 %v1471, %v1471
    %v1488 = vmul.f32 %v1472, %v1472
    %v1489 = vmul.f32 %v1473, %v1473
    %v1490 = vmul.f32 %v1474, %v1474
    %v1491 = vmul.f32 %v1475, %v1475
    %v1492 = vmul.f32 %v1476, %v1476
    %v1493 = vmul.f32 %v1477, %v1477
    %v1494 = vmul.f32 %v1478, %v1478
    %v1495 = vmul.f32 %v1479, %v1479
    %v1496 = vmul.f32 %v1480, %v1480
    %v1497 = vmul.f32 %v1481, %v1481
    %v1498 = vmul.f32 %v1482, %v1482
    %v1499 = vmul.f32 %v1483, %v1483
    %1516 = vrot.lane.b32.xlu0 %v1484, 32
    %v1517 = vpop.permute.xlu0 %1516
    %1518 = vrot.lane.b32.xlu0 %v1485, 32
    %v1519 = vpop.permute.xlu0 %1518
    %1520 = vrot.lane.b32.xlu0 %v1486, 32
    %v1521 = vpop.permute.xlu0 %1520
    %1522 = vrot.lane.b32.xlu0 %v1487, 32
    %v1523 = vpop.permute.xlu0 %1522
    %1524 = vrot.lane.b32.xlu0 %v1488, 32
    %v1525 = vpop.permute.xlu0 %1524
    %1526 = vrot.lane.b32.xlu0 %v1489, 32
    %v1527 = vpop.permute.xlu0 %1526
    %1528 = vrot.lane.b32.xlu0 %v1490, 32
    %v1529 = vpop.permute.xlu0 %1528
    %1530 = vrot.lane.b32.xlu0 %v1491, 32
    %v1531 = vpop.permute.xlu0 %1530
    %1532 = vrot.lane.b32.xlu0 %v1492, 32
    %v1533 = vpop.permute.xlu0 %1532
    %1534 = vrot.lane.b32.xlu0 %v1493, 32
    %v1535 = vpop.permute.xlu0 %1534
    %1536 = vrot.lane.b32.xlu0 %v1494, 32
    %v1537 = vpop.permute.xlu0 %1536
    %1538 = vrot.lane.b32.xlu0 %v1495, 32
    %v1539 = vpop.permute.xlu0 %1538
    %1540 = vrot.lane.b32.xlu0 %v1496, 32
    %v1541 = vpop.permute.xlu0 %1540
    %1542 = vrot.lane.b32.xlu0 %v1497, 32
    %v1543 = vpop.permute.xlu0 %1542
    %1544 = vrot.lane.b32.xlu0 %v1498, 32
    %v1545 = vpop.permute.xlu0 %1544
    %1546 = vrot.lane.b32.xlu0 %v1499, 32
    %v1547 = vpop.permute.xlu0 %1546
    %v1564 = vsel %vm199, %v1517, 0.0
    %1565 = vadd.xlane.f32.xlu0 %v1564
    %v1566 = vpop.xlane.xlu0 %1565
    %v1567 = vsel %vm199, %v1519, 0.0
    %1568 = vadd.xlane.f32.xlu0 %v1567
    %v1569 = vpop.xlane.xlu0 %1568
    %v1570 = vsel %vm199, %v1521, 0.0
    %1571 = vadd.xlane.f32.xlu0 %v1570
    %v1572 = vpop.xlane.xlu0 %1571
    %v1573 = vsel %vm199, %v1523, 0.0
    %1574 = vadd.xlane.f32.xlu0 %v1573
    %v1575 = vpop.xlane.xlu0 %1574
    %v1576 = vsel %vm199, %v1525, 0.0
    %1577 = vadd.xlane.f32.xlu0 %v1576
    %v1578 = vpop.xlane.xlu0 %1577
    %v1579 = vsel %vm199, %v1527, 0.0
    %1580 = vadd.xlane.f32.xlu0 %v1579
    %v1581 = vpop.xlane.xlu0 %1580
    %v1582 = vsel %vm199, %v1529, 0.0
    %1583 = vadd.xlane.f32.xlu0 %v1582
    %v1584 = vpop.xlane.xlu0 %1583
    %v1585 = vsel %vm199, %v1531, 0.0
    %1586 = vadd.xlane.f32.xlu0 %v1585
    %v1587 = vpop.xlane.xlu0 %1586
    %v1588 = vsel %vm199, %v1533, 0.0
    %1589 = vadd.xlane.f32.xlu0 %v1588
    %v1590 = vpop.xlane.xlu0 %1589
    %v1591 = vsel %vm199, %v1535, 0.0
    %1592 = vadd.xlane.f32.xlu0 %v1591
    %v1593 = vpop.xlane.xlu0 %1592
    %v1594 = vsel %vm199, %v1537, 0.0
    %1595 = vadd.xlane.f32.xlu0 %v1594
    %v1596 = vpop.xlane.xlu0 %1595
    %v1597 = vsel %vm199, %v1539, 0.0
    %1598 = vadd.xlane.f32.xlu0 %v1597
    %v1599 = vpop.xlane.xlu0 %1598
    %v1600 = vsel %vm199, %v1541, 0.0
    %1601 = vadd.xlane.f32.xlu0 %v1600
    %v1602 = vpop.xlane.xlu0 %1601
    %v1603 = vsel %vm199, %v1543, 0.0
    %1604 = vadd.xlane.f32.xlu0 %v1603
    %v1605 = vpop.xlane.xlu0 %1604
    %v1606 = vsel %vm199, %v1545, 0.0
    %1607 = vadd.xlane.f32.xlu0 %v1606
    %v1608 = vpop.xlane.xlu0 %1607
    %v1609 = vsel %vm199, %v1547, 0.0
    %1610 = vadd.xlane.f32.xlu0 %v1609
    %v1611 = vpop.xlane.xlu0 %1610
    %v1612 = vmul.f32 %v1566, 0.03125
    %v1613 = vmul.f32 %v1569, 0.03125
    %v1614 = vmul.f32 %v1572, 0.03125
    %v1615 = vmul.f32 %v1575, 0.03125
    %v1616 = vmul.f32 %v1578, 0.03125
    %v1617 = vmul.f32 %v1581, 0.03125
    %v1618 = vmul.f32 %v1584, 0.03125
    %v1619 = vmul.f32 %v1587, 0.03125
    %v1620 = vmul.f32 %v1590, 0.03125
    %v1621 = vmul.f32 %v1593, 0.03125
    %v1622 = vmul.f32 %v1596, 0.03125
    %v1623 = vmul.f32 %v1599, 0.03125
    %v1624 = vmul.f32 %v1602, 0.03125
    %v1625 = vmul.f32 %v1605, 0.03125
    %v1626 = vmul.f32 %v1608, 0.03125
    %v1627 = vmul.f32 %v1611, 0.03125
    %v1628 = vadd.f32 %v1612, 1e-05
    %v1629 = vadd.f32 %v1613, 1e-05
    %v1630 = vadd.f32 %v1614, 1e-05
    %v1631 = vadd.f32 %v1615, 1e-05
    %v1632 = vadd.f32 %v1616, 1e-05
    %v1633 = vadd.f32 %v1617, 1e-05
    %v1634 = vadd.f32 %v1618, 1e-05
    %v1635 = vadd.f32 %v1619, 1e-05
    %v1636 = vadd.f32 %v1620, 1e-05
    %v1637 = vadd.f32 %v1621, 1e-05
    %v1638 = vadd.f32 %v1622, 1e-05
    %v1639 = vadd.f32 %v1623, 1e-05
    %v1640 = vadd.f32 %v1624, 1e-05
    %v1641 = vadd.f32 %v1625, 1e-05
    %v1642 = vadd.f32 %v1626, 1e-05
    %v1643 = vadd.f32 %v1627, 1e-05
    %v1644 = vrsqrt.pop %v1628
    %v1645 = vrsqrt.pop %v1629
    %v1646 = vrsqrt.pop %v1630
    %v1647 = vrsqrt.pop %v1631
    %v1648 = vrsqrt.pop %v1632
    %v1649 = vrsqrt.pop %v1633
    %v1650 = vrsqrt.pop %v1634
    %v1651 = vrsqrt.pop %v1635
    %v1652 = vrsqrt.pop %v1636
    %v1653 = vrsqrt.pop %v1637
    %v1654 = vrsqrt.pop %v1638
    %v1655 = vrsqrt.pop %v1639
    %v1656 = vrsqrt.pop %v1640
    %v1657 = vrsqrt.pop %v1641
    %v1658 = vrsqrt.pop %v1642
    %v1659 = vrsqrt.pop %v1643
    %v1660 = vmul.f32 %v1644, %v396
    %v1661 = vmul.f32 %v1645, %v396
    %v1662 = vmul.f32 %v1646, %v396
    %v1663 = vmul.f32 %v1647, %v396
    %v1664 = vmul.f32 %v1648, %v396
    %v1665 = vmul.f32 %v1649, %v396
    %v1666 = vmul.f32 %v1650, %v396
    %v1667 = vmul.f32 %v1651, %v396
    %v1668 = vmul.f32 %v1652, %v396
    %v1669 = vmul.f32 %v1653, %v396
    %v1670 = vmul.f32 %v1654, %v396
    %v1671 = vmul.f32 %v1655, %v396
    %v1672 = vmul.f32 %v1656, %v396
    %v1673 = vmul.f32 %v1657, %v396
    %v1674 = vmul.f32 %v1658, %v396
    %v1675 = vmul.f32 %v1659, %v396
    %1692 = vrot.lane.b32.xlu0 %v1660, 96
    %v1693 = vpop.permute.xlu0 %1692
    %1694 = vrot.lane.b32.xlu0 %v1661, 96
    %v1695 = vpop.permute.xlu0 %1694
    %1696 = vrot.lane.b32.xlu0 %v1662, 96
    %v1697 = vpop.permute.xlu0 %1696
    %1698 = vrot.lane.b32.xlu0 %v1663, 96
    %v1699 = vpop.permute.xlu0 %1698
    %1700 = vrot.lane.b32.xlu0 %v1664, 96
    %v1701 = vpop.permute.xlu0 %1700
    %1702 = vrot.lane.b32.xlu0 %v1665, 96
    %v1703 = vpop.permute.xlu0 %1702
    %1704 = vrot.lane.b32.xlu0 %v1666, 96
    %v1705 = vpop.permute.xlu0 %1704
    %1706 = vrot.lane.b32.xlu0 %v1667, 96
    %v1707 = vpop.permute.xlu0 %1706
    %1708 = vrot.lane.b32.xlu0 %v1668, 96
    %v1709 = vpop.permute.xlu0 %1708
    %1710 = vrot.lane.b32.xlu0 %v1669, 96
    %v1711 = vpop.permute.xlu0 %1710
    %1712 = vrot.lane.b32.xlu0 %v1670, 96
    %v1713 = vpop.permute.xlu0 %1712
    %1714 = vrot.lane.b32.xlu0 %v1671, 96
    %v1715 = vpop.permute.xlu0 %1714
    %1716 = vrot.lane.b32.xlu0 %v1672, 96
    %v1717 = vpop.permute.xlu0 %1716
    %1718 = vrot.lane.b32.xlu0 %v1673, 96
    %v1719 = vpop.permute.xlu0 %1718
    %1720 = vrot.lane.b32.xlu0 %v1674, 96
    %v1721 = vpop.permute.xlu0 %1720
    %1722 = vrot.lane.b32.xlu0 %v1675, 96
    %v1723 = vpop.permute.xlu0 %1722
    %v1740 = vmul.f32 %v1468, %v1693
    %v1741 = vmul.f32 %v1469, %v1695
    %v1742 = vmul.f32 %v1470, %v1697
    %v1743 = vmul.f32 %v1471, %v1699
    %v1744 = vmul.f32 %v1472, %v1701
    %v1745 = vmul.f32 %v1473, %v1703
    %v1746 = vmul.f32 %v1474, %v1705
    %v1747 = vmul.f32 %v1475, %v1707
    %v1748 = vmul.f32 %v1476, %v1709
    %v1749 = vmul.f32 %v1477, %v1711
    %v1750 = vmul.f32 %v1478, %v1713
    %v1751 = vmul.f32 %v1479, %v1715
    %v1752 = vmul.f32 %v1480, %v1717
    %v1753 = vmul.f32 %v1481, %v1719
    %v1754 = vmul.f32 %v1482, %v1721
    %v1755 = vmul.f32 %v1483, %v1723
    %1756 = vrot.lane.b32.xlu0 %v434, 96
    %v1757 = vpop.permute.xlu0 %1756
    %v1759 = vadd.f32 %v1740, %v1757
    %v1760 = vadd.f32 %v1741, %v1757
    %v1761 = vadd.f32 %v1742, %v1757
    %v1762 = vadd.f32 %v1743, %v1757
    %v1763 = vadd.f32 %v1744, %v1757
    %v1764 = vadd.f32 %v1745, %v1757
    %v1765 = vadd.f32 %v1746, %v1757
    %v1766 = vadd.f32 %v1747, %v1757
    %v1767 = vadd.f32 %v1748, %v1757
    %v1768 = vadd.f32 %v1749, %v1757
    %v1769 = vadd.f32 %v1750, %v1757
    %v1770 = vadd.f32 %v1751, %v1757
    %v1771 = vadd.f32 %v1752, %v1757
    %v1772 = vadd.f32 %v1753, %v1757
    %v1773 = vadd.f32 %v1754, %v1757
    %v1774 = vadd.f32 %v1755, %v1757
    %vm1775 = vcmask 1048320
    %1776 = vst.msk [vmem:[#allocation2] sm:$0xff] %vm1775, %v1759
    %1777 = vst.msk [vmem:[#allocation2 + $0x8] sm:$0xff] %vm1775, %v1760
    %1778 = vst.msk [vmem:[#allocation2 + $0x10] sm:$0xff] %vm1775, %v1761
    %1779 = vst.msk [vmem:[#allocation2 + $0x18] sm:$0xff] %vm1775, %v1762
    %1780 = vst.msk [vmem:[#allocation2 + $0x20] sm:$0xff] %vm1775, %v1763
    %1781 = vst.msk [vmem:[#allocation2 + $0x28] sm:$0xff] %vm1775, %v1764
    %1782 = vst.msk [vmem:[#allocation2 + $0x30] sm:$0xff] %vm1775, %v1765
    %1783 = vst.msk [vmem:[#allocation2 + $0x38] sm:$0xff] %vm1775, %v1766
    %1784 = vst.msk [vmem:[#allocation2 + $0x40] sm:$0xff] %vm1775, %v1767
    %1785 = vst.msk [vmem:[#allocation2 + $0x48] sm:$0xff] %vm1775, %v1768
    %1786 = vst.msk [vmem:[#allocation2 + $0x50] sm:$0xff] %vm1775, %v1769
    %1787 = vst.msk [vmem:[#allocation2 + $0x58] sm:$0xff] %vm1775, %v1770
    %1788 = vst.msk [vmem:[#allocation2 + $0x60] sm:$0xff] %vm1775, %v1771
    %1789 = vst.msk [vmem:[#allocation2 + $0x68] sm:$0xff] %vm1775, %v1772
    %1790 = vst.msk [vmem:[#allocation2 + $0x70] sm:$0xff] %vm1775, %v1773
    %1791 = vst.msk [vmem:[#allocation2 + $0x78] sm:$0xff] %vm1775, %v1774
    // Predicated region
    $region18: #{tpu_custom_call.1} parent=1 // pred_check
      _
    $region19: #{tpu_custom_call.1} parent=1 // pred_check_branch
      %1793 = sbr.rel (0) target = $region21
    $region20: #{tpu_custom_call.1} parent=1 // pred_region
      %s1795 = ssub.s32 2048, 2048
      %1796 = vsyncadd [#allocation3], %s1795
      %s1797 = sshll.u32 [#allocation2], 4
      %s1798 = int_to_ptr.vmem [resolvable:$true] %s1797
      %1803 = dma.vmem_to_hbm [thread:$0]  %s1798, 2048, %s4, [#allocation3], 128, 128, 8
    $region21: #{tpu_custom_call.1} parent=1 // pred_fallthru
      _
    // Predicated region
    $region22: #{tpu_custom_call.1} parent=1 // pred_check
      _
    $region23: #{tpu_custom_call.1} parent=1 // pred_check_branch
      %1805 = sbr.rel (0) target = $region25
    $region24: #{tpu_custom_call.1} parent=1 // pred_region
      %1806 = dma.done [#allocation3], 2048
    $region25: #{tpu_custom_call.1} parent=1 // pred_fallthru
      _
    %1807 = vsyncpa [#allocation3], 1

</llo_original>
